<compile_context>
chip_gen: v6e
topology: v6e:2x2x1
jax: 0.10.0
libtpu: 0.0.40
codegen_flags: <defaults>
</compile_context>

<pallas_src>
import functools

import jax
import jax.numpy as jnp
from jax.experimental import pallas as pl
from jax.experimental.pallas import tpu as pltpu

LAYER_DIMS = [512, 256, 128, 64, 64, 64, 64, 64]  # fc1..fc8 widths (ReLU after each)
LANE = 128
SUBLANE = 8


def _round_up(n, m):
    return ((n + m - 1) // m) * m


# ---------------------------------------------------------------------------
# Kernel
# ---------------------------------------------------------------------------
def deep_dnn_kernel(x_ref, biases_ref, *rest):
    """rest = (w1_ref, ..., w9_ref, o_ref).

    x_ref:      (TB, in_pad)  bf16 batch tile (pipelined per grid step)
    biases_ref: (9, 512)      f32, VMEM-resident (constant index_map)
    w*_ref:     bf16 zero-padded weights, VMEM-resident (constant index_map)
    o_ref:      (TB, out_pad) f32 output tile
    """
    o_ref = rest[-1]
    w_refs = rest[:-1]
    n_layers = len(w_refs)

    h = x_ref[...]                                    # bf16, no in-kernel cast
    for li in range(n_layers):
        w = w_refs[li][...]                           # bf16 (in_pad_i, out_pad_i)
        out_pad = w.shape[1]
        b = biases_ref[li:li + 1, 0:out_pad]          # f32 (1, out_pad), static slice
        acc = jnp.dot(h, w, preferred_element_type=jnp.float32) + b
        if li < n_layers - 1:                         # ReLU on fc1..fc8, not fc9
            # ReLU on the f32 accumulator, single bf16 cast (cheap epilogue;
            # rides under the MXU push slot on all generations).
            h = jnp.maximum(acc, 0.0).astype(jnp.bfloat16)
        else:
            h = acc                                   # fc9 output stays f32
    o_ref[...] = h.astype(o_ref.dtype)


# ---------------------------------------------------------------------------
# Parameter init (PyTorch nn.Linear-style), padding + dtype hoisted here
# ---------------------------------------------------------------------------
def init_params(key, in_features, out_dim):
    """uniform(-1/sqrt(fan_in), 1/sqrt(fan_in)) init, then:
      * zero-pad every in/out width up to a multiple of 128 lanes,
      * weights stored in bf16 (biases stay f32 for the f32 accumulator add),
      * all nine biases packed into one (9, 512) f32 array.
    Returns (weights_tuple, biases_array)."""
    dims = [in_features] + LAYER_DIMS + [out_dim]
    max_out_pad = max(_round_up(d, LANE) for d in dims[1:])   # 512
    weights, bias_rows = [], []
    for i in range(len(dims) - 1):
        fan_in, fan_out = dims[i], dims[i + 1]
        key, kw, kb = jax.random.split(key, 3)
        bound = 1.0 / float(fan_in) ** 0.5
        w = jax.random.uniform(kw, (fan_in, fan_out), jnp.float32, -bound, bound)
        b = jax.random.uniform(kb, (fan_out,), jnp.float32, -bound, bound)
        pad_in = _round_up(fan_in, LANE) - fan_in
        pad_out = _round_up(fan_out, LANE) - fan_out
        weights.append(jnp.pad(w, ((0, pad_in), (0, pad_out))).astype(jnp.bfloat16))
        bias_rows.append(jnp.pad(b, (0, max_out_pad - fan_out)))
    biases = jnp.stack(bias_rows)                              # (9, 512) f32
    return tuple(weights), biases


# ---------------------------------------------------------------------------
# Tile-size / VMEM policy (per TPU generation)
# ---------------------------------------------------------------------------
def _tile_cap_and_vmem():
    """Returns (batch_tile_cap, vmem_limit_bytes, prefer_even_grid).

    v5e / v6e: 128 MiB physical VMEM, single TensorCore -> TB up to 1024,
               64 MiB scoped limit, no even-grid preference.
    v7x / unknown: 64 MiB physical VMEM (32 MiB scoped default), 2 TCs ->
               TB capped at 512 (fits comfortably), prefer an even grid so
               dimension_semantics=("parallel",) keeps both cores busy.
    """
    try:
        kind = jax.devices()[0].device_kind.lower()
    except Exception:
        kind = ""
    big_vmem_single_core = any(
        tag in kind for tag in ("v5 lite", "v5e", "v5litepod", "v6 lite", "v6e"))
    if big_vmem_single_core:
        return 1024, 64 << 20, False
    return 512, 32 << 20, True


def _choose_tb(B, cap, prefer_even_grid):
    """Pick the batch tile (multiple of 8, <= cap).

    Preference order:
      1. bounded padded-row waste (<= max(B/8, 8) throwaway rows),
      2. an even grid of >= 2 steps when prefer_even_grid (v7x megacore),
      3. the largest tile (amortizes the ~0.35 us per-step overhead and the
         per-step re-push of all nine layers' RHS weights into the MXU).
    """
    b8 = _round_up(B, SUBLANE)
    if b8 <= 2 * SUBLANE:
        return b8
    best_key, best_tb = None, SUBLANE
    tb = SUBLANE
    while tb <= min(cap, b8):
        steps = -(-b8 // tb)
        waste = steps * tb - B
        waste_ok = waste <= max(B // 8, SUBLANE)
        even_ok = (steps >= 2 and steps % 2 == 0) if prefer_even_grid else True
        key = (waste_ok, even_ok, tb)
        if best_key is None or key > best_key:
            best_key, best_tb = key, tb
        tb *= 2
    return best_tb


# ---------------------------------------------------------------------------
# Forward wrapper
# ---------------------------------------------------------------------------
@functools.partial(jax.jit, static_argnames=("in_features", "out_dim"))
def deep_dnn_forward(x, weights, biases, *, in_features, out_dim):
    """x: (B, C, H, W) float32 (NCHW, like PyTorch). Returns (B, out_dim) f32."""
    B = x.shape[0]
    x2d = x.reshape(B, -1)
    # Guard against params built for a different flattened width.
    assert x2d.shape[1] == in_features, (
        f"x flattens to {x2d.shape[1]} features, params expect {in_features}")
    in_pad = weights[0].shape[0]
    assert in_pad == _round_up(in_features, LANE), (in_pad, in_features)
    out_pad_dim = weights[-1].shape[1]
    assert out_dim <= out_pad_dim

    cap, vmem_limit, prefer_even = _tile_cap_and_vmem()
    TB = _choose_tb(B, cap, prefer_even)
    B_pad = _round_up(B, TB)

    # bf16 input: fold the cast into the pad copy -> halves the dominant
    # per-step input DMA and removes the in-kernel cast.
    x2d = jnp.pad(x2d.astype(jnp.bfloat16),
                  ((0, B_pad - B), (0, in_pad - in_features)))

    # x tile is pipelined over the batch grid; biases + weights use constant
    # index_maps so they stay resident in VMEM across grid steps.
    in_specs = [pl.BlockSpec((TB, in_pad), lambda i: (i, 0)),
                pl.BlockSpec(biases.shape, lambda i: (0, 0))]
    in_specs += [pl.BlockSpec(w.shape, lambda i: (0, 0)) for w in weights]

    out_padded = pl.pallas_call(
        deep_dnn_kernel,
        out_shape=jax.ShapeDtypeStruct((B_pad, out_pad_dim), jnp.float32),
        grid=(B_pad // TB,),
        in_specs=in_specs,
        out_specs=pl.BlockSpec((TB, out_pad_dim), lambda i: (i, 0)),
        compiler_params=pltpu.CompilerParams(
            dimension_semantics=("parallel",),
            vmem_limit_bytes=vmem_limit,
        ),
    )(x2d, biases, *weights)

    return out_padded[:B, :out_dim]


# ---------------------------------------------------------------------------
# Pure-JAX reference (same bf16-weights / f32-accum numerics as the kernel)
# ---------------------------------------------------------------------------
def deep_dnn_ref(x, weights, biases, out_dim):
    h = x.reshape(x.shape[0], -1)
    in_pad = weights[0].shape[0]
    h = jnp.pad(h, ((0, 0), (0, in_pad - h.shape[1]))).astype(jnp.bfloat16)
    for i, w in enumerate(weights):
        b = biases[i:i + 1, :w.shape[1]]
        acc = jnp.dot(h, w, preferred_element_type=jnp.float32) + b
        if i < len(weights) - 1:
            h = jnp.maximum(acc, 0.0).astype(jnp.bfloat16)
        else:
            h = acc
    return h[:, :out_dim]


if __name__ == "__main__":
    key = jax.random.PRNGKey(0)
    k_x, k_p = jax.random.split(key)

    # Small NCHW input consistent with the module: in_features = C*H*W = 1024
    B, C, H, W = 2, 4, 16, 16
    in_features = C * H * W
    out_dim = 1

    x = jax.random.normal(k_x, (B, C, H, W), jnp.float32)
    weights, biases = init_params(k_p, in_features, out_dim)

    out = jax.block_until_ready(
        deep_dnn_forward(x, weights, biases, in_features=in_features, out_dim=out_dim))
    ref = jax.block_until_ready(deep_dnn_ref(x, weights, biases, out_dim))

    assert out.shape == (B, out_dim), out.shape
    assert jnp.allclose(out, ref, atol=1e-2, rtol=1e-2), (out, ref)

    print("KERNEL_OK")
</pallas_src>

<mosaic_0001>
module attributes {stable_mosaic.version = 11 : i64} {
  func.func @deep_dnn_kernel(%arg0: i32, %arg1: memref<8x1024xbf16, #tpu.memory_space<vmem>>, %arg2: memref<9x512xf32, #tpu.memory_space<vmem>>, %arg3: memref<1024x512xbf16, #tpu.memory_space<vmem>>, %arg4: memref<512x256xbf16, #tpu.memory_space<vmem>>, %arg5: memref<256x128xbf16, #tpu.memory_space<vmem>>, %arg6: memref<128x128xbf16, #tpu.memory_space<vmem>>, %arg7: memref<128x128xbf16, #tpu.memory_space<vmem>>, %arg8: memref<128x128xbf16, #tpu.memory_space<vmem>>, %arg9: memref<128x128xbf16, #tpu.memory_space<vmem>>, %arg10: memref<128x128xbf16, #tpu.memory_space<vmem>>, %arg11: memref<128x128xbf16, #tpu.memory_space<vmem>>, %arg12: memref<8x128xf32, #tpu.memory_space<vmem>>) attributes {dimension_semantics = [#tpu.dimension_semantics<parallel>], iteration_bounds = array<i64: 1>, scalar_prefetch = 0 : i64, scratch_operands = 0 : i64, tpu.core_type = #tpu.core_type<tc>, window_params = [{transform_indices = @transform_0, window_bounds = array<i64: 8, 1024>}, {pipeline_mode = #tpu.pipeline_mode<synchronous>, transform_indices = @transform_1, window_bounds = array<i64: 9, 512>}, {pipeline_mode = #tpu.pipeline_mode<synchronous>, transform_indices = @transform_2, window_bounds = array<i64: 1024, 512>}, {pipeline_mode = #tpu.pipeline_mode<synchronous>, transform_indices = @transform_3, window_bounds = array<i64: 512, 256>}, {pipeline_mode = #tpu.pipeline_mode<synchronous>, transform_indices = @transform_4, window_bounds = array<i64: 256, 128>}, {pipeline_mode = #tpu.pipeline_mode<synchronous>, transform_indices = @transform_5, window_bounds = array<i64: 128, 128>}, {pipeline_mode = #tpu.pipeline_mode<synchronous>, transform_indices = @transform_6, window_bounds = array<i64: 128, 128>}, {pipeline_mode = #tpu.pipeline_mode<synchronous>, transform_indices = @transform_7, window_bounds = array<i64: 128, 128>}, {pipeline_mode = #tpu.pipeline_mode<synchronous>, transform_indices = @transform_8, window_bounds = array<i64: 128, 128>}, {pipeline_mode = #tpu.pipeline_mode<synchronous>, transform_indices = @transform_9, window_bounds = array<i64: 128, 128>}, {pipeline_mode = #tpu.pipeline_mode<synchronous>, transform_indices = @transform_10, window_bounds = array<i64: 128, 128>}, {transform_indices = @transform_11, window_bounds = array<i64: 8, 128>}]} {
    %c0 = arith.constant 0 : index
    %c0_0 = arith.constant 0 : index
    %0 = vector.load %arg1[%c0, %c0_0] : memref<8x1024xbf16, #tpu.memory_space<vmem>>, vector<8x1024xbf16>
    %c0_1 = arith.constant 0 : index
    %c0_2 = arith.constant 0 : index
    %1 = vector.load %arg3[%c0_1, %c0_2] : memref<1024x512xbf16, #tpu.memory_space<vmem>>, vector<1024x512xbf16>
    %c0_3 = arith.constant 0 : index
    %c0_4 = arith.constant 0 : index
    %2 = vector.load %arg2[%c0_3, %c0_4] : memref<9x512xf32, #tpu.memory_space<vmem>>, vector<1x512xf32>
    %cst = arith.constant dense<0.000000e+00> : vector<8x512xf32>
    %3 = tpu.matmul %0, %1, %cst {dimension_numbers = #tpu.dot_dimension_numbers<[1], [0], [0], [1], [0, 0, 1, 1], [], []>} : vector<8x1024xbf16>, vector<1024x512xbf16>, vector<8x512xf32> -> vector<8x512xf32>
    %4 = vector.broadcast %2 : vector<1x512xf32> to vector<8x512xf32>
    %5 = arith.addf %3, %4 : vector<8x512xf32>
    %cst_5 = arith.constant 0.000000e+00 : f32
    %6 = vector.broadcast %cst_5 : f32 to vector<8x512xf32>
    %7 = arith.maximumf %5, %6 : vector<8x512xf32>
    %8 = arith.truncf %7 : vector<8x512xf32> to vector<8x512xbf16>
    %c0_6 = arith.constant 0 : index
    %c0_7 = arith.constant 0 : index
    %9 = vector.load %arg4[%c0_6, %c0_7] : memref<512x256xbf16, #tpu.memory_space<vmem>>, vector<512x256xbf16>
    %c1 = arith.constant 1 : index
    %c0_8 = arith.constant 0 : index
    %10 = vector.load %arg2[%c1, %c0_8] : memref<9x512xf32, #tpu.memory_space<vmem>>, vector<1x256xf32>
    %cst_9 = arith.constant dense<0.000000e+00> : vector<8x256xf32>
    %11 = tpu.matmul %8, %9, %cst_9 {dimension_numbers = #tpu.dot_dimension_numbers<[1], [0], [0], [1], [0, 0, 1, 1], [], []>} : vector<8x512xbf16>, vector<512x256xbf16>, vector<8x256xf32> -> vector<8x256xf32>
    %12 = vector.broadcast %10 : vector<1x256xf32> to vector<8x256xf32>
    %13 = arith.addf %11, %12 : vector<8x256xf32>
    %cst_10 = arith.constant 0.000000e+00 : f32
    %14 = vector.broadcast %cst_10 : f32 to vector<8x256xf32>
    %15 = arith.maximumf %13, %14 : vector<8x256xf32>
    %16 = arith.truncf %15 : vector<8x256xf32> to vector<8x256xbf16>
    %c0_11 = arith.constant 0 : index
    %c0_12 = arith.constant 0 : index
    %17 = vector.load %arg5[%c0_11, %c0_12] : memref<256x128xbf16, #tpu.memory_space<vmem>>, vector<256x128xbf16>
    %c2 = arith.constant 2 : index
    %c0_13 = arith.constant 0 : index
    %18 = vector.load %arg2[%c2, %c0_13] : memref<9x512xf32, #tpu.memory_space<vmem>>, vector<1x128xf32>
    %cst_14 = arith.constant dense<0.000000e+00> : vector<8x128xf32>
    %19 = tpu.matmul %16, %17, %cst_14 {dimension_numbers = #tpu.dot_dimension_numbers<[1], [0], [0], [1], [0, 0, 1, 1], [], []>} : vector<8x256xbf16>, vector<256x128xbf16>, vector<8x128xf32> -> vector<8x128xf32>
    %20 = vector.broadcast %18 : vector<1x128xf32> to vector<8x128xf32>
    %21 = arith.addf %19, %20 : vector<8x128xf32>
    %cst_15 = arith.constant 0.000000e+00 : f32
    %22 = vector.broadcast %cst_15 : f32 to vector<8x128xf32>
    %23 = arith.maximumf %21, %22 : vector<8x128xf32>
    %24 = arith.truncf %23 : vector<8x128xf32> to vector<8x128xbf16>
    %c0_16 = arith.constant 0 : index
    %c0_17 = arith.constant 0 : index
    %25 = vector.load %arg6[%c0_16, %c0_17] : memref<128x128xbf16, #tpu.memory_space<vmem>>, vector<128x128xbf16>
    %c3 = arith.constant 3 : index
    %c0_18 = arith.constant 0 : index
    %26 = vector.load %arg2[%c3, %c0_18] : memref<9x512xf32, #tpu.memory_space<vmem>>, vector<1x128xf32>
    %cst_19 = arith.constant dense<0.000000e+00> : vector<8x128xf32>
    %27 = tpu.matmul %24, %25, %cst_19 {dimension_numbers = #tpu.dot_dimension_numbers<[1], [0], [0], [1], [0, 0, 1, 1], [], []>} : vector<8x128xbf16>, vector<128x128xbf16>, vector<8x128xf32> -> vector<8x128xf32>
    %28 = vector.broadcast %26 : vector<1x128xf32> to vector<8x128xf32>
    %29 = arith.addf %27, %28 : vector<8x128xf32>
    %cst_20 = arith.constant 0.000000e+00 : f32
    %30 = vector.broadcast %cst_20 : f32 to vector<8x128xf32>
    %31 = arith.maximumf %29, %30 : vector<8x128xf32>
    %32 = arith.truncf %31 : vector<8x128xf32> to vector<8x128xbf16>
    %c0_21 = arith.constant 0 : index
    %c0_22 = arith.constant 0 : index
    %33 = vector.load %arg7[%c0_21, %c0_22] : memref<128x128xbf16, #tpu.memory_space<vmem>>, vector<128x128xbf16>
    %c4 = arith.constant 4 : index
    %c0_23 = arith.constant 0 : index
    %34 = vector.load %arg2[%c4, %c0_23] : memref<9x512xf32, #tpu.memory_space<vmem>>, vector<1x128xf32>
    %cst_24 = arith.constant dense<0.000000e+00> : vector<8x128xf32>
    %35 = tpu.matmul %32, %33, %cst_24 {dimension_numbers = #tpu.dot_dimension_numbers<[1], [0], [0], [1], [0, 0, 1, 1], [], []>} : vector<8x128xbf16>, vector<128x128xbf16>, vector<8x128xf32> -> vector<8x128xf32>
    %36 = vector.broadcast %34 : vector<1x128xf32> to vector<8x128xf32>
    %37 = arith.addf %35, %36 : vector<8x128xf32>
    %cst_25 = arith.constant 0.000000e+00 : f32
    %38 = vector.broadcast %cst_25 : f32 to vector<8x128xf32>
    %39 = arith.maximumf %37, %38 : vector<8x128xf32>
    %40 = arith.truncf %39 : vector<8x128xf32> to vector<8x128xbf16>
    %c0_26 = arith.constant 0 : index
    %c0_27 = arith.constant 0 : index
    %41 = vector.load %arg8[%c0_26, %c0_27] : memref<128x128xbf16, #tpu.memory_space<vmem>>, vector<128x128xbf16>
    %c5 = arith.constant 5 : index
    %c0_28 = arith.constant 0 : index
    %42 = vector.load %arg2[%c5, %c0_28] : memref<9x512xf32, #tpu.memory_space<vmem>>, vector<1x128xf32>
    %cst_29 = arith.constant dense<0.000000e+00> : vector<8x128xf32>
    %43 = tpu.matmul %40, %41, %cst_29 {dimension_numbers = #tpu.dot_dimension_numbers<[1], [0], [0], [1], [0, 0, 1, 1], [], []>} : vector<8x128xbf16>, vector<128x128xbf16>, vector<8x128xf32> -> vector<8x128xf32>
    %44 = vector.broadcast %42 : vector<1x128xf32> to vector<8x128xf32>
    %45 = arith.addf %43, %44 : vector<8x128xf32>
    %cst_30 = arith.constant 0.000000e+00 : f32
    %46 = vector.broadcast %cst_30 : f32 to vector<8x128xf32>
    %47 = arith.maximumf %45, %46 : vector<8x128xf32>
    %48 = arith.truncf %47 : vector<8x128xf32> to vector<8x128xbf16>
    %c0_31 = arith.constant 0 : index
    %c0_32 = arith.constant 0 : index
    %49 = vector.load %arg9[%c0_31, %c0_32] : memref<128x128xbf16, #tpu.memory_space<vmem>>, vector<128x128xbf16>
    %c6 = arith.constant 6 : index
    %c0_33 = arith.constant 0 : index
    %50 = vector.load %arg2[%c6, %c0_33] : memref<9x512xf32, #tpu.memory_space<vmem>>, vector<1x128xf32>
    %cst_34 = arith.constant dense<0.000000e+00> : vector<8x128xf32>
    %51 = tpu.matmul %48, %49, %cst_34 {dimension_numbers = #tpu.dot_dimension_numbers<[1], [0], [0], [1], [0, 0, 1, 1], [], []>} : vector<8x128xbf16>, vector<128x128xbf16>, vector<8x128xf32> -> vector<8x128xf32>
    %52 = vector.broadcast %50 : vector<1x128xf32> to vector<8x128xf32>
    %53 = arith.addf %51, %52 : vector<8x128xf32>
    %cst_35 = arith.constant 0.000000e+00 : f32
    %54 = vector.broadcast %cst_35 : f32 to vector<8x128xf32>
    %55 = arith.maximumf %53, %54 : vector<8x128xf32>
    %56 = arith.truncf %55 : vector<8x128xf32> to vector<8x128xbf16>
    %c0_36 = arith.constant 0 : index
    %c0_37 = arith.constant 0 : index
    %57 = vector.load %arg10[%c0_36, %c0_37] : memref<128x128xbf16, #tpu.memory_space<vmem>>, vector<128x128xbf16>
    %c7 = arith.constant 7 : index
    %c0_38 = arith.constant 0 : index
    %58 = vector.load %arg2[%c7, %c0_38] : memref<9x512xf32, #tpu.memory_space<vmem>>, vector<1x128xf32>
    %cst_39 = arith.constant dense<0.000000e+00> : vector<8x128xf32>
    %59 = tpu.matmul %56, %57, %cst_39 {dimension_numbers = #tpu.dot_dimension_numbers<[1], [0], [0], [1], [0, 0, 1, 1], [], []>} : vector<8x128xbf16>, vector<128x128xbf16>, vector<8x128xf32> -> vector<8x128xf32>
    %60 = vector.broadcast %58 : vector<1x128xf32> to vector<8x128xf32>
    %61 = arith.addf %59, %60 : vector<8x128xf32>
    %cst_40 = arith.constant 0.000000e+00 : f32
    %62 = vector.broadcast %cst_40 : f32 to vector<8x128xf32>
    %63 = arith.maximumf %61, %62 : vector<8x128xf32>
    %64 = arith.truncf %63 : vector<8x128xf32> to vector<8x128xbf16>
    %c0_41 = arith.constant 0 : index
    %c0_42 = arith.constant 0 : index
    %65 = vector.load %arg11[%c0_41, %c0_42] : memref<128x128xbf16, #tpu.memory_space<vmem>>, vector<128x128xbf16>
    %c8 = arith.constant 8 : index
    %c0_43 = arith.constant 0 : index
    %66 = vector.load %arg2[%c8, %c0_43] : memref<9x512xf32, #tpu.memory_space<vmem>>, vector<1x128xf32>
    %cst_44 = arith.constant dense<0.000000e+00> : vector<8x128xf32>
    %67 = tpu.matmul %64, %65, %cst_44 {dimension_numbers = #tpu.dot_dimension_numbers<[1], [0], [0], [1], [0, 0, 1, 1], [], []>} : vector<8x128xbf16>, vector<128x128xbf16>, vector<8x128xf32> -> vector<8x128xf32>
    %68 = vector.broadcast %66 : vector<1x128xf32> to vector<8x128xf32>
    %69 = arith.addf %67, %68 : vector<8x128xf32>
    %c0_45 = arith.constant 0 : index
    %c0_46 = arith.constant 0 : index
    %70 = vector.load %arg12[%c0_45, %c0_46] : memref<8x128xf32, #tpu.memory_space<vmem>>, vector<8x128xf32>
    tpu.vector_store %arg12[%c0_45, %c0_46], %69 {strides = array<i32>} : memref<8x128xf32, #tpu.memory_space<vmem>>, vector<8x128xf32>,
    return
  }
  func.func @transform_0(%arg0: i32) -> (i32, i32) {
    %c0_i32 = arith.constant 0 : i32
    %c0_i32_0 = arith.constant 0 : i32
    return %arg0, %c0_i32 : i32, i32
  }
  func.func @transform_1(%arg0: i32) -> (i32, i32) {
    %c0_i32 = arith.constant 0 : i32
    %c0_i32_0 = arith.constant 0 : i32
    %c0_i32_1 = arith.constant 0 : i32
    return %c0_i32, %c0_i32_0 : i32, i32
  }
  func.func @transform_2(%arg0: i32) -> (i32, i32) {
    %c0_i32 = arith.constant 0 : i32
    %c0_i32_0 = arith.constant 0 : i32
    %c0_i32_1 = arith.constant 0 : i32
    return %c0_i32, %c0_i32_0 : i32, i32
  }
  func.func @transform_3(%arg0: i32) -> (i32, i32) {
    %c0_i32 = arith.constant 0 : i32
    %c0_i32_0 = arith.constant 0 : i32
    %c0_i32_1 = arith.constant 0 : i32
    return %c0_i32, %c0_i32_0 : i32, i32
  }
  func.func @transform_4(%arg0: i32) -> (i32, i32) {
    %c0_i32 = arith.constant 0 : i32
    %c0_i32_0 = arith.constant 0 : i32
    %c0_i32_1 = arith.constant 0 : i32
    return %c0_i32, %c0_i32_0 : i32, i32
  }
  func.func @transform_5(%arg0: i32) -> (i32, i32) {
    %c0_i32 = arith.constant 0 : i32
    %c0_i32_0 = arith.constant 0 : i32
    %c0_i32_1 = arith.constant 0 : i32
    return %c0_i32, %c0_i32_0 : i32, i32
  }
  func.func @transform_6(%arg0: i32) -> (i32, i32) {
    %c0_i32 = arith.constant 0 : i32
    %c0_i32_0 = arith.constant 0 : i32
    %c0_i32_1 = arith.constant 0 : i32
    return %c0_i32, %c0_i32_0 : i32, i32
  }
  func.func @transform_7(%arg0: i32) -> (i32, i32) {
    %c0_i32 = arith.constant 0 : i32
    %c0_i32_0 = arith.constant 0 : i32
    %c0_i32_1 = arith.constant 0 : i32
    return %c0_i32, %c0_i32_0 : i32, i32
  }
  func.func @transform_8(%arg0: i32) -> (i32, i32) {
    %c0_i32 = arith.constant 0 : i32
    %c0_i32_0 = arith.constant 0 : i32
    %c0_i32_1 = arith.constant 0 : i32
    return %c0_i32, %c0_i32_0 : i32, i32
  }
  func.func @transform_9(%arg0: i32) -> (i32, i32) {
    %c0_i32 = arith.constant 0 : i32
    %c0_i32_0 = arith.constant 0 : i32
    %c0_i32_1 = arith.constant 0 : i32
    return %c0_i32, %c0_i32_0 : i32, i32
  }
  func.func @transform_10(%arg0: i32) -> (i32, i32) {
    %c0_i32 = arith.constant 0 : i32
    %c0_i32_0 = arith.constant 0 : i32
    %c0_i32_1 = arith.constant 0 : i32
    return %c0_i32, %c0_i32_0 : i32, i32
  }
  func.func @transform_11(%arg0: i32) -> (i32, i32) {
    %c0_i32 = arith.constant 0 : i32
    %c0_i32_0 = arith.constant 0 : i32
    return %arg0, %c0_i32 : i32, i32
  }
}

</mosaic_0001>

<llo_original>
// kernel: deep_dnn_forward.1
$region0: #{deep_dnn_forward.1}
  #allocation0 [shape = 'u32[]', space=smem, size = 0x4, offset = 0x4, fixed_abs, tag = 'smem constant byte address 0x4 - core index']
  #allocation1 [shape = 'u32[144,128]{1,0:T(1,128)}', space=vmem, size = 0x12000, scoped, tag = 'internal scratch']
  %s0 = inlined_call_operand.vmem [shape: bf16[8,1024], index: 0, kind: input, shape index: {}]
  %s1 = inlined_call_operand.vmem [shape: f32[9,512], index: 1, kind: input, shape index: {}]
  %s2 = inlined_call_operand.hbm [shape: bf16[1024,512], index: 2, kind: input, shape index: {}]
  %s3 = inlined_call_operand.hbm [shape: bf16[512,256], index: 3, kind: input, shape index: {}]
  %s4 = inlined_call_operand.vmem [shape: bf16[256,128], index: 4, kind: input, shape index: {}]
  %s5 = inlined_call_operand.vmem [shape: bf16[128,128], index: 5, kind: input, shape index: {}]
  %s6 = inlined_call_operand.hbm [shape: bf16[128,128], index: 6, kind: input, shape index: {}]
  %s7 = inlined_call_operand.hbm [shape: bf16[128,128], index: 7, kind: input, shape index: {}]
  %s8 = inlined_call_operand.hbm [shape: bf16[128,128], index: 8, kind: input, shape index: {}]
  %s9 = inlined_call_operand.hbm [shape: bf16[128,128], index: 9, kind: input, shape index: {}]
  %s10 = inlined_call_operand.hbm [shape: bf16[128,128], index: 10, kind: input, shape index: {}]
  %s11 = inlined_call_operand.vmem [shape: f32[8,128], index: 11, kind: output, shape index: {}]
  %s12 = sld [smem:[#allocation0]]
  $region82: #{deep_dnn_forward.1} parent=0
    _
  %s14 = ssub.s32 1, %s12
  %s15 = scalar_select 0, %s14, %s12
  $region1: #{deep_dnn_forward.1} parent=0
    #allocation2 [shape = 'u8[1048576]{0}', space=vmem, size = 0x100000, scoped, tag = 'input window, operand 2, single buffered']
    #allocation3 [shape = 's32[1]{0}', space=sflag, size = 0x4, scoped, tag = 'scoped memory for deep_dnn_forward.1']
    #allocation4 [shape = 'u8[262144]{0}', space=vmem, size = 0x40000, scoped, tag = 'input window, operand 3, single buffered']
    #allocation5 [shape = 's32[1]{0}', space=sflag, size = 0x4, scoped, tag = 'scoped memory for deep_dnn_forward.1']
    #allocation6 [shape = 'u8[32768]{0}', space=vmem, size = 0x8000, scoped, tag = 'input window, operand 6, single buffered']
    #allocation7 [shape = 'u8[32768]{0}', space=vmem, size = 0x8000, scoped, tag = 'input window, operand 7, single buffered']
    #allocation8 [shape = 's32[1]{0}', space=sflag, size = 0x4, scoped, tag = 'scoped memory for deep_dnn_forward.1']
    #allocation9 [shape = 'u8[32768]{0}', space=vmem, size = 0x8000, scoped, tag = 'input window, operand 8, single buffered']
    #allocation10 [shape = 'u8[32768]{0}', space=vmem, size = 0x8000, scoped, tag = 'input window, operand 9, single buffered']
    #allocation11 [shape = 's32[1]{0}', space=sflag, size = 0x4, scoped, tag = 'scoped memory for deep_dnn_forward.1']
    #allocation12 [shape = 'u8[32768]{0}', space=vmem, size = 0x8000, scoped, tag = 'input window, operand 10, single buffered']
    %16 = vsyncpa [#allocation3], 0
    %17 = vsyncpa [#allocation5], 0
    %18 = vsyncpa [#allocation8], 0
    %19 = vsyncpa [#allocation11], 0
    // Predicated region
    $region2: #{deep_dnn_forward.1} parent=1 // pred_check
      _
    $region3: #{deep_dnn_forward.1} parent=1 // pred_check_branch
      %21 = sbr.rel (0) target = $region5
    $region4: #{deep_dnn_forward.1} parent=1 // pred_region
      _
    $region5: #{deep_dnn_forward.1} parent=1 // pred_fallthru
      _
    // Predicated region
    $region6: #{deep_dnn_forward.1} parent=1 // pred_check
      _
    $region7: #{deep_dnn_forward.1} parent=1 // pred_check_branch
      %23 = sbr.rel (0) target = $region9
    $region8: #{deep_dnn_forward.1} parent=1 // pred_region
      _
    $region9: #{deep_dnn_forward.1} parent=1 // pred_fallthru
      _
    // Predicated region
    $region10: #{deep_dnn_forward.1} parent=1 // pred_check
      _
    $region11: #{deep_dnn_forward.1} parent=1 // pred_check_branch
      %25 = sbr.rel (0) target = $region13
    $region12: #{deep_dnn_forward.1} parent=1 // pred_region
      %s27 = ssub.s32 32768, 32768
      %28 = vsyncadd [#allocation3], %s27
      %s29 = sshll.u32 [#allocation2], 4
      %s30 = int_to_ptr.vmem [resolvable:$true] %s29
      %35 = dma.hbm_to_vmem [thread:$0]  %s2, 32768, %s30, [#allocation3], 256, 256, 16
    $region13: #{deep_dnn_forward.1} parent=1 // pred_fallthru
      _
    // Predicated region
    $region14: #{deep_dnn_forward.1} parent=1 // pred_check
      _
    $region15: #{deep_dnn_forward.1} parent=1 // pred_check_branch
      %37 = sbr.rel (0) target = $region17
    $region16: #{deep_dnn_forward.1} parent=1 // pred_region
      %s39 = ssub.s32 8192, 8192
      %40 = vsyncadd [#allocation5], %s39
      %s41 = sshll.u32 [#allocation4], 4
      %s42 = int_to_ptr.vmem [resolvable:$true] %s41
      %47 = dma.hbm_to_vmem [thread:$0]  %s3, 8192, %s42, [#allocation5], 128, 128, 8
    $region17: #{deep_dnn_forward.1} parent=1 // pred_fallthru
      _
    // Predicated region
    $region18: #{deep_dnn_forward.1} parent=1 // pred_check
      _
    $region19: #{deep_dnn_forward.1} parent=1 // pred_check_branch
      %49 = sbr.rel (0) target = $region21
    $region20: #{deep_dnn_forward.1} parent=1 // pred_region
      _
    $region21: #{deep_dnn_forward.1} parent=1 // pred_fallthru
      _
    // Predicated region
    $region22: #{deep_dnn_forward.1} parent=1 // pred_check
      _
    $region23: #{deep_dnn_forward.1} parent=1 // pred_check_branch
      %51 = sbr.rel (0) target = $region25
    $region24: #{deep_dnn_forward.1} parent=1 // pred_region
      _
    $region25: #{deep_dnn_forward.1} parent=1 // pred_fallthru
      _
    // Predicated region
    $region26: #{deep_dnn_forward.1} parent=1 // pred_check
      _
    $region27: #{deep_dnn_forward.1} parent=1 // pred_check_branch
      %53 = sbr.rel (0) target = $region29
    $region28: #{deep_dnn_forward.1} parent=1 // pred_region
      %s55 = ssub.s32 1024, 1024
      %56 = vsyncadd [#allocation5], %s55
      %s57 = sshll.u32 [#allocation6], 4
      %s58 = int_to_ptr.vmem [resolvable:$true] %s57
      %63 = dma.hbm_to_vmem [thread:$0]  %s6, 1024, %s58, [#allocation5], 64, 64, 4
    $region29: #{deep_dnn_forward.1} parent=1 // pred_fallthru
      _
    // Predicated region
    $region30: #{deep_dnn_forward.1} parent=1 // pred_check
      _
    $region31: #{deep_dnn_forward.1} parent=1 // pred_check_branch
      %65 = sbr.rel (0) target = $region33
    $region32: #{deep_dnn_forward.1} parent=1 // pred_region
      %s67 = ssub.s32 1024, 1024
      %68 = vsyncadd [#allocation8], %s67
      %s69 = sshll.u32 [#allocation7], 4
      %s70 = int_to_ptr.vmem [resolvable:$true] %s69
      %75 = dma.hbm_to_vmem [thread:$0]  %s7, 1024, %s70, [#allocation8], 64, 64, 4
    $region33: #{deep_dnn_forward.1} parent=1 // pred_fallthru
      _
    // Predicated region
    $region34: #{deep_dnn_forward.1} parent=1 // pred_check
      _
    $region35: #{deep_dnn_forward.1} parent=1 // pred_check_branch
      %77 = sbr.rel (0) target = $region37
    $region36: #{deep_dnn_forward.1} parent=1 // pred_region
      %s79 = ssub.s32 1024, 1024
      %80 = vsyncadd [#allocation8], %s79
      %s81 = sshll.u32 [#allocation9], 4
      %s82 = int_to_ptr.vmem [resolvable:$true] %s81
      %87 = dma.hbm_to_vmem [thread:$0]  %s8, 1024, %s82, [#allocation8], 64, 64, 4
    $region37: #{deep_dnn_forward.1} parent=1 // pred_fallthru
      _
    // Predicated region
    $region38: #{deep_dnn_forward.1} parent=1 // pred_check
      _
    $region39: #{deep_dnn_forward.1} parent=1 // pred_check_branch
      %89 = sbr.rel (0) target = $region41
    $region40: #{deep_dnn_forward.1} parent=1 // pred_region
      %s91 = ssub.s32 1024, 1024
      %92 = vsyncadd [#allocation11], %s91
      %s93 = sshll.u32 [#allocation10], 4
      %s94 = int_to_ptr.vmem [resolvable:$true] %s93
      %99 = dma.hbm_to_vmem [thread:$0]  %s9, 1024, %s94, [#allocation11], 64, 64, 4
    $region41: #{deep_dnn_forward.1} parent=1 // pred_fallthru
      _
    // Predicated region
    $region42: #{deep_dnn_forward.1} parent=1 // pred_check
      _
    $region43: #{deep_dnn_forward.1} parent=1 // pred_check_branch
      %101 = sbr.rel (0) target = $region45
    $region44: #{deep_dnn_forward.1} parent=1 // pred_region
      %s103 = ssub.s32 1024, 1024
      %104 = vsyncadd [#allocation11], %s103
      %s105 = sshll.u32 [#allocation12], 4
      %s106 = int_to_ptr.vmem [resolvable:$true] %s105
      %111 = dma.hbm_to_vmem [thread:$0]  %s10, 1024, %s106, [#allocation11], 64, 64, 4
    $region45: #{deep_dnn_forward.1} parent=1 // pred_fallthru
      _
    // Predicated region
    $region46: #{deep_dnn_forward.1} parent=1 // pred_check
      _
    $region47: #{deep_dnn_forward.1} parent=1 // pred_check_branch
      %113 = sbr.rel (0) target = $region49
    $region48: #{deep_dnn_forward.1} parent=1 // pred_region
      %114 = dma.done [#allocation3], 32768
    $region49: #{deep_dnn_forward.1} parent=1 // pred_fallthru
      _
    // Predicated region
    $region50: #{deep_dnn_forward.1} parent=1 // pred_check
      _
    $region51: #{deep_dnn_forward.1} parent=1 // pred_check_branch
      %116 = sbr.rel (0) target = $region53
    $region52: #{deep_dnn_forward.1} parent=1 // pred_region
      %117 = dma.done [#allocation5], 8192
    $region53: #{deep_dnn_forward.1} parent=1 // pred_fallthru
      _
    // Predicated region
    $region54: #{deep_dnn_forward.1} parent=1 // pred_check
      _
    $region55: #{deep_dnn_forward.1} parent=1 // pred_check_branch
      %119 = sbr.rel (0) target = $region57
    $region56: #{deep_dnn_forward.1} parent=1 // pred_region
      %120 = dma.done [#allocation5], 1024
    $region57: #{deep_dnn_forward.1} parent=1 // pred_fallthru
      _
    // Predicated region
    $region58: #{deep_dnn_forward.1} parent=1 // pred_check
      _
    $region59: #{deep_dnn_forward.1} parent=1 // pred_check_branch
      %122 = sbr.rel (0) target = $region61
    $region60: #{deep_dnn_forward.1} parent=1 // pred_region
      %123 = dma.done [#allocation8], 1024
    $region61: #{deep_dnn_forward.1} parent=1 // pred_fallthru
      _
    // Predicated region
    $region62: #{deep_dnn_forward.1} parent=1 // pred_check
      _
    $region63: #{deep_dnn_forward.1} parent=1 // pred_check_branch
      %125 = sbr.rel (0) target = $region65
    $region64: #{deep_dnn_forward.1} parent=1 // pred_region
      %126 = dma.done [#allocation8], 1024
    $region65: #{deep_dnn_forward.1} parent=1 // pred_fallthru
      _
    // Predicated region
    $region66: #{deep_dnn_forward.1} parent=1 // pred_check
      _
    $region67: #{deep_dnn_forward.1} parent=1 // pred_check_branch
      %128 = sbr.rel (0) target = $region69
    $region68: #{deep_dnn_forward.1} parent=1 // pred_region
      %129 = dma.done [#allocation11], 1024
    $region69: #{deep_dnn_forward.1} parent=1 // pred_fallthru
      _
    // Predicated region
    $region70: #{deep_dnn_forward.1} parent=1 // pred_check
      _
    $region71: #{deep_dnn_forward.1} parent=1 // pred_check_branch
      %131 = sbr.rel (0) target = $region73
    $region72: #{deep_dnn_forward.1} parent=1 // pred_region
      %132 = dma.done [#allocation11], 1024
    $region73: #{deep_dnn_forward.1} parent=1 // pred_fallthru
      _
    %v134 = vld [vmem:[%s0] sm:$0xff]
    %v135 = vld [vmem:[%s0 + $0x8] sm:$0xff]
    %v136 = vld [vmem:[%s0 + $0x10] sm:$0xff]
    %v137 = vld [vmem:[%s0 + $0x18] sm:$0xff]
    %v138 = vld [vmem:[#allocation2] sm:$0xff]
    %v139 = vld [vmem:[#allocation2 + $0x8] sm:$0xff]
    %v140 = vld [vmem:[#allocation2 + $0x10] sm:$0xff]
    %v141 = vld [vmem:[#allocation2 + $0x18] sm:$0xff]
    %v142 = vld [vmem:[#allocation2 + $0x20] sm:$0xff]
    %v143 = vld [vmem:[#allocation2 + $0x28] sm:$0xff]
    %v144 = vld [vmem:[#allocation2 + $0x30] sm:$0xff]
    %v145 = vld [vmem:[#allocation2 + $0x38] sm:$0xff]
    %v146 = vld [vmem:[#allocation2 + $0x40] sm:$0xff]
    %v147 = vld [vmem:[#allocation2 + $0x48] sm:$0xff]
    %v148 = vld [vmem:[#allocation2 + $0x50] sm:$0xff]
    %v149 = vld [vmem:[#allocation2 + $0x58] sm:$0xff]
    %v150 = vld [vmem:[#allocation2 + $0x60] sm:$0xff]
    %v151 = vld [vmem:[#allocation2 + $0x68] sm:$0xff]
    %v152 = vld [vmem:[#allocation2 + $0x70] sm:$0xff]
    %v153 = vld [vmem:[#allocation2 + $0x78] sm:$0xff]
    %v154 = vld [vmem:[#allocation2 + $0x80] sm:$0xff]
    %v155 = vld [vmem:[#allocation2 + $0x88] sm:$0xff]
    %v156 = vld [vmem:[#allocation2 + $0x90] sm:$0xff]
    %v157 = vld [vmem:[#allocation2 + $0x98] sm:$0xff]
    %v158 = vld [vmem:[#allocation2 + $0xa0] sm:$0xff]
    %v159 = vld [vmem:[#allocation2 + $0xa8] sm:$0xff]
    %v160 = vld [vmem:[#allocation2 + $0xb0] sm:$0xff]
    %v161 = vld [vmem:[#allocation2 + $0xb8] sm:$0xff]
    %v162 = vld [vmem:[#allocation2 + $0xc0] sm:$0xff]
    %v163 = vld [vmem:[#allocation2 + $0xc8] sm:$0xff]
    %v164 = vld [vmem:[#allocation2 + $0xd0] sm:$0xff]
    %v165 = vld [vmem:[#allocation2 + $0xd8] sm:$0xff]
    %v166 = vld [vmem:[#allocation2 + $0xe0] sm:$0xff]
    %v167 = vld [vmem:[#allocation2 + $0xe8] sm:$0xff]
    %v168 = vld [vmem:[#allocation2 + $0xf0] sm:$0xff]
    %v169 = vld [vmem:[#allocation2 + $0xf8] sm:$0xff]
    %v170 = vld [vmem:[#allocation2 + $0x100] sm:$0xff]
    %v171 = vld [vmem:[#allocation2 + $0x108] sm:$0xff]
    %v172 = vld [vmem:[#allocation2 + $0x110] sm:$0xff]
    %v173 = vld [vmem:[#allocation2 + $0x118] sm:$0xff]
    %v174 = vld [vmem:[#allocation2 + $0x120] sm:$0xff]
    %v175 = vld [vmem:[#allocation2 + $0x128] sm:$0xff]
    %v176 = vld [vmem:[#allocation2 + $0x130] sm:$0xff]
    %v177 = vld [vmem:[#allocation2 + $0x138] sm:$0xff]
    %v178 = vld [vmem:[#allocation2 + $0x140] sm:$0xff]
    %v179 = vld [vmem:[#allocation2 + $0x148] sm:$0xff]
    %v180 = vld [vmem:[#allocation2 + $0x150] sm:$0xff]
    %v181 = vld [vmem:[#allocation2 + $0x158] sm:$0xff]
    %v182 = vld [vmem:[#allocation2 + $0x160] sm:$0xff]
    %v183 = vld [vmem:[#allocation2 + $0x168] sm:$0xff]
    %v184 = vld [vmem:[#allocation2 + $0x170] sm:$0xff]
    %v185 = vld [vmem:[#allocation2 + $0x178] sm:$0xff]
    %v186 = vld [vmem:[#allocation2 + $0x180] sm:$0xff]
    %v187 = vld [vmem:[#allocation2 + $0x188] sm:$0xff]
    %v188 = vld [vmem:[#allocation2 + $0x190] sm:$0xff]
    %v189 = vld [vmem:[#allocation2 + $0x198] sm:$0xff]
    %v190 = vld [vmem:[#allocation2 + $0x1a0] sm:$0xff]
    %v191 = vld [vmem:[#allocation2 + $0x1a8] sm:$0xff]
    %v192 = vld [vmem:[#allocation2 + $0x1b0] sm:$0xff]
    %v193 = vld [vmem:[#allocation2 + $0x1b8] sm:$0xff]
    %v194 = vld [vmem:[#allocation2 + $0x1c0] sm:$0xff]
    %v195 = vld [vmem:[#allocation2 + $0x1c8] sm:$0xff]
    %v196 = vld [vmem:[#allocation2 + $0x1d0] sm:$0xff]
    %v197 = vld [vmem:[#allocation2 + $0x1d8] sm:$0xff]
    %v198 = vld [vmem:[#allocation2 + $0x1e0] sm:$0xff]
    %v199 = vld [vmem:[#allocation2 + $0x1e8] sm:$0xff]
    %v200 = vld [vmem:[#allocation2 + $0x1f0] sm:$0xff]
    %v201 = vld [vmem:[#allocation2 + $0x1f8] sm:$0xff]
    %v202 = vld [vmem:[#allocation2 + $0x200] sm:$0xff]
    %v203 = vld [vmem:[#allocation2 + $0x208] sm:$0xff]
    %v204 = vld [vmem:[#allocation2 + $0x210] sm:$0xff]
    %v205 = vld [vmem:[#allocation2 + $0x218] sm:$0xff]
    %v206 = vld [vmem:[#allocation2 + $0x220] sm:$0xff]
    %v207 = vld [vmem:[#allocation2 + $0x228] sm:$0xff]
    %v208 = vld [vmem:[#allocation2 + $0x230] sm:$0xff]
    %v209 = vld [vmem:[#allocation2 + $0x238] sm:$0xff]
    %v210 = vld [vmem:[#allocation2 + $0x240] sm:$0xff]
    %v211 = vld [vmem:[#allocation2 + $0x248] sm:$0xff]
    %v212 = vld [vmem:[#allocation2 + $0x250] sm:$0xff]
    %v213 = vld [vmem:[#allocation2 + $0x258] sm:$0xff]
    %v214 = vld [vmem:[#allocation2 + $0x260] sm:$0xff]
    %v215 = vld [vmem:[#allocation2 + $0x268] sm:$0xff]
    %v216 = vld [vmem:[#allocation2 + $0x270] sm:$0xff]
    %v217 = vld [vmem:[#allocation2 + $0x278] sm:$0xff]
    %v218 = vld [vmem:[#allocation2 + $0x280] sm:$0xff]
    %v219 = vld [vmem:[#allocation2 + $0x288] sm:$0xff]
    %v220 = vld [vmem:[#allocation2 + $0x290] sm:$0xff]
    %v221 = vld [vmem:[#allocation2 + $0x298] sm:$0xff]
    %v222 = vld [vmem:[#allocation2 + $0x2a0] sm:$0xff]
    %v223 = vld [vmem:[#allocation2 + $0x2a8] sm:$0xff]
    %v224 = vld [vmem:[#allocation2 + $0x2b0] sm:$0xff]
    %v225 = vld [vmem:[#allocation2 + $0x2b8] sm:$0xff]
    %v226 = vld [vmem:[#allocation2 + $0x2c0] sm:$0xff]
    %v227 = vld [vmem:[#allocation2 + $0x2c8] sm:$0xff]
    %v228 = vld [vmem:[#allocation2 + $0x2d0] sm:$0xff]
    %v229 = vld [vmem:[#allocation2 + $0x2d8] sm:$0xff]
    %v230 = vld [vmem:[#allocation2 + $0x2e0] sm:$0xff]
    %v231 = vld [vmem:[#allocation2 + $0x2e8] sm:$0xff]
    %v232 = vld [vmem:[#allocation2 + $0x2f0] sm:$0xff]
    %v233 = vld [vmem:[#allocation2 + $0x2f8] sm:$0xff]
    %v234 = vld [vmem:[#allocation2 + $0x300] sm:$0xff]
    %v235 = vld [vmem:[#allocation2 + $0x308] sm:$0xff]
    %v236 = vld [vmem:[#allocation2 + $0x310] sm:$0xff]
    %v237 = vld [vmem:[#allocation2 + $0x318] sm:$0xff]
    %v238 = vld [vmem:[#allocation2 + $0x320] sm:$0xff]
    %v239 = vld [vmem:[#allocation2 + $0x328] sm:$0xff]
    %v240 = vld [vmem:[#allocation2 + $0x330] sm:$0xff]
    %v241 = vld [vmem:[#allocation2 + $0x338] sm:$0xff]
    %v242 = vld [vmem:[#allocation2 + $0x340] sm:$0xff]
    %v243 = vld [vmem:[#allocation2 + $0x348] sm:$0xff]
    %v244 = vld [vmem:[#allocation2 + $0x350] sm:$0xff]
    %v245 = vld [vmem:[#allocation2 + $0x358] sm:$0xff]
    %v246 = vld [vmem:[#allocation2 + $0x360] sm:$0xff]
    %v247 = vld [vmem:[#allocation2 + $0x368] sm:$0xff]
    %v248 = vld [vmem:[#allocation2 + $0x370] sm:$0xff]
    %v249 = vld [vmem:[#allocation2 + $0x378] sm:$0xff]
    %v250 = vld [vmem:[#allocation2 + $0x380] sm:$0xff]
    %v251 = vld [vmem:[#allocation2 + $0x388] sm:$0xff]
    %v252 = vld [vmem:[#allocation2 + $0x390] sm:$0xff]
    %v253 = vld [vmem:[#allocation2 + $0x398] sm:$0xff]
    %v254 = vld [vmem:[#allocation2 + $0x3a0] sm:$0xff]
    %v255 = vld [vmem:[#allocation2 + $0x3a8] sm:$0xff]
    %v256 = vld [vmem:[#allocation2 + $0x3b0] sm:$0xff]
    %v257 = vld [vmem:[#allocation2 + $0x3b8] sm:$0xff]
    %v258 = vld [vmem:[#allocation2 + $0x3c0] sm:$0xff]
    %v259 = vld [vmem:[#allocation2 + $0x3c8] sm:$0xff]
    %v260 = vld [vmem:[#allocation2 + $0x3d0] sm:$0xff]
    %v261 = vld [vmem:[#allocation2 + $0x3d8] sm:$0xff]
    %v262 = vld [vmem:[#allocation2 + $0x3e0] sm:$0xff]
    %v263 = vld [vmem:[#allocation2 + $0x3e8] sm:$0xff]
    %v264 = vld [vmem:[#allocation2 + $0x3f0] sm:$0xff]
    %v265 = vld [vmem:[#allocation2 + $0x3f8] sm:$0xff]
    %v266 = vld [vmem:[#allocation2 + $0x400] sm:$0xff]
    %v267 = vld [vmem:[#allocation2 + $0x408] sm:$0xff]
    %v268 = vld [vmem:[#allocation2 + $0x410] sm:$0xff]
    %v269 = vld [vmem:[#allocation2 + $0x418] sm:$0xff]
    %v270 = vld [vmem:[#allocation2 + $0x420] sm:$0xff]
    %v271 = vld [vmem:[#allocation2 + $0x428] sm:$0xff]
    %v272 = vld [vmem:[#allocation2 + $0x430] sm:$0xff]
    %v273 = vld [vmem:[#allocation2 + $0x438] sm:$0xff]
    %v274 = vld [vmem:[#allocation2 + $0x440] sm:$0xff]
    %v275 = vld [vmem:[#allocation2 + $0x448] sm:$0xff]
    %v276 = vld [vmem:[#allocation2 + $0x450] sm:$0xff]
    %v277 = vld [vmem:[#allocation2 + $0x458] sm:$0xff]
    %v278 = vld [vmem:[#allocation2 + $0x460] sm:$0xff]
    %v279 = vld [vmem:[#allocation2 + $0x468] sm:$0xff]
    %v280 = vld [vmem:[#allocation2 + $0x470] sm:$0xff]
    %v281 = vld [vmem:[#allocation2 + $0x478] sm:$0xff]
    %v282 = vld [vmem:[#allocation2 + $0x480] sm:$0xff]
    %v283 = vld [vmem:[#allocation2 + $0x488] sm:$0xff]
    %v284 = vld [vmem:[#allocation2 + $0x490] sm:$0xff]
    %v285 = vld [vmem:[#allocation2 + $0x498] sm:$0xff]
    %v286 = vld [vmem:[#allocation2 + $0x4a0] sm:$0xff]
    %v287 = vld [vmem:[#allocation2 + $0x4a8] sm:$0xff]
    %v288 = vld [vmem:[#allocation2 + $0x4b0] sm:$0xff]
    %v289 = vld [vmem:[#allocation2 + $0x4b8] sm:$0xff]
    %v290 = vld [vmem:[#allocation2 + $0x4c0] sm:$0xff]
    %v291 = vld [vmem:[#allocation2 + $0x4c8] sm:$0xff]
    %v292 = vld [vmem:[#allocation2 + $0x4d0] sm:$0xff]
    %v293 = vld [vmem:[#allocation2 + $0x4d8] sm:$0xff]
    %v294 = vld [vmem:[#allocation2 + $0x4e0] sm:$0xff]
    %v295 = vld [vmem:[#allocation2 + $0x4e8] sm:$0xff]
    %v296 = vld [vmem:[#allocation2 + $0x4f0] sm:$0xff]
    %v297 = vld [vmem:[#allocation2 + $0x4f8] sm:$0xff]
    %v298 = vld [vmem:[#allocation2 + $0x500] sm:$0xff]
    %v299 = vld [vmem:[#allocation2 + $0x508] sm:$0xff]
    %v300 = vld [vmem:[#allocation2 + $0x510] sm:$0xff]
    %v301 = vld [vmem:[#allocation2 + $0x518] sm:$0xff]
    %v302 = vld [vmem:[#allocation2 + $0x520] sm:$0xff]
    %v303 = vld [vmem:[#allocation2 + $0x528] sm:$0xff]
    %v304 = vld [vmem:[#allocation2 + $0x530] sm:$0xff]
    %v305 = vld [vmem:[#allocation2 + $0x538] sm:$0xff]
    %v306 = vld [vmem:[#allocation2 + $0x540] sm:$0xff]
    %v307 = vld [vmem:[#allocation2 + $0x548] sm:$0xff]
    %v308 = vld [vmem:[#allocation2 + $0x550] sm:$0xff]
    %v309 = vld [vmem:[#allocation2 + $0x558] sm:$0xff]
    %v310 = vld [vmem:[#allocation2 + $0x560] sm:$0xff]
    %v311 = vld [vmem:[#allocation2 + $0x568] sm:$0xff]
    %v312 = vld [vmem:[#allocation2 + $0x570] sm:$0xff]
    %v313 = vld [vmem:[#allocation2 + $0x578] sm:$0xff]
    %v314 = vld [vmem:[#allocation2 + $0x580] sm:$0xff]
    %v315 = vld [vmem:[#allocation2 + $0x588] sm:$0xff]
    %v316 = vld [vmem:[#allocation2 + $0x590] sm:$0xff]
    %v317 = vld [vmem:[#allocation2 + $0x598] sm:$0xff]
    %v318 = vld [vmem:[#allocation2 + $0x5a0] sm:$0xff]
    %v319 = vld [vmem:[#allocation2 + $0x5a8] sm:$0xff]
    %v320 = vld [vmem:[#allocation2 + $0x5b0] sm:$0xff]
    %v321 = vld [vmem:[#allocation2 + $0x5b8] sm:$0xff]
    %v322 = vld [vmem:[#allocation2 + $0x5c0] sm:$0xff]
    %v323 = vld [vmem:[#allocation2 + $0x5c8] sm:$0xff]
    %v324 = vld [vmem:[#allocation2 + $0x5d0] sm:$0xff]
    %v325 = vld [vmem:[#allocation2 + $0x5d8] sm:$0xff]
    %v326 = vld [vmem:[#allocation2 + $0x5e0] sm:$0xff]
    %v327 = vld [vmem:[#allocation2 + $0x5e8] sm:$0xff]
    %v328 = vld [vmem:[#allocation2 + $0x5f0] sm:$0xff]
    %v329 = vld [vmem:[#allocation2 + $0x5f8] sm:$0xff]
    %v330 = vld [vmem:[#allocation2 + $0x600] sm:$0xff]
    %v331 = vld [vmem:[#allocation2 + $0x608] sm:$0xff]
    %v332 = vld [vmem:[#allocation2 + $0x610] sm:$0xff]
    %v333 = vld [vmem:[#allocation2 + $0x618] sm:$0xff]
    %v334 = vld [vmem:[#allocation2 + $0x620] sm:$0xff]
    %v335 = vld [vmem:[#allocation2 + $0x628] sm:$0xff]
    %v336 = vld [vmem:[#allocation2 + $0x630] sm:$0xff]
    %v337 = vld [vmem:[#allocation2 + $0x638] sm:$0xff]
    %v338 = vld [vmem:[#allocation2 + $0x640] sm:$0xff]
    %v339 = vld [vmem:[#allocation2 + $0x648] sm:$0xff]
    %v340 = vld [vmem:[#allocation2 + $0x650] sm:$0xff]
    %v341 = vld [vmem:[#allocation2 + $0x658] sm:$0xff]
    %v342 = vld [vmem:[#allocation2 + $0x660] sm:$0xff]
    %v343 = vld [vmem:[#allocation2 + $0x668] sm:$0xff]
    %v344 = vld [vmem:[#allocation2 + $0x670] sm:$0xff]
    %v345 = vld [vmem:[#allocation2 + $0x678] sm:$0xff]
    %v346 = vld [vmem:[#allocation2 + $0x680] sm:$0xff]
    %v347 = vld [vmem:[#allocation2 + $0x688] sm:$0xff]
    %v348 = vld [vmem:[#allocation2 + $0x690] sm:$0xff]
    %v349 = vld [vmem:[#allocation2 + $0x698] sm:$0xff]
    %v350 = vld [vmem:[#allocation2 + $0x6a0] sm:$0xff]
    %v351 = vld [vmem:[#allocation2 + $0x6a8] sm:$0xff]
    %v352 = vld [vmem:[#allocation2 + $0x6b0] sm:$0xff]
    %v353 = vld [vmem:[#allocation2 + $0x6b8] sm:$0xff]
    %v354 = vld [vmem:[#allocation2 + $0x6c0] sm:$0xff]
    %v355 = vld [vmem:[#allocation2 + $0x6c8] sm:$0xff]
    %v356 = vld [vmem:[#allocation2 + $0x6d0] sm:$0xff]
    %v357 = vld [vmem:[#allocation2 + $0x6d8] sm:$0xff]
    %v358 = vld [vmem:[#allocation2 + $0x6e0] sm:$0xff]
    %v359 = vld [vmem:[#allocation2 + $0x6e8] sm:$0xff]
    %v360 = vld [vmem:[#allocation2 + $0x6f0] sm:$0xff]
    %v361 = vld [vmem:[#allocation2 + $0x6f8] sm:$0xff]
    %v362 = vld [vmem:[#allocation2 + $0x700] sm:$0xff]
    %v363 = vld [vmem:[#allocation2 + $0x708] sm:$0xff]
    %v364 = vld [vmem:[#allocation2 + $0x710] sm:$0xff]
    %v365 = vld [vmem:[#allocation2 + $0x718] sm:$0xff]
    %v366 = vld [vmem:[#allocation2 + $0x720] sm:$0xff]
    %v367 = vld [vmem:[#allocation2 + $0x728] sm:$0xff]
    %v368 = vld [vmem:[#allocation2 + $0x730] sm:$0xff]
    %v369 = vld [vmem:[#allocation2 + $0x738] sm:$0xff]
    %v370 = vld [vmem:[#allocation2 + $0x740] sm:$0xff]
    %v371 = vld [vmem:[#allocation2 + $0x748] sm:$0xff]
    %v372 = vld [vmem:[#allocation2 + $0x750] sm:$0xff]
    %v373 = vld [vmem:[#allocation2 + $0x758] sm:$0xff]
    %v374 = vld [vmem:[#allocation2 + $0x760] sm:$0xff]
    %v375 = vld [vmem:[#allocation2 + $0x768] sm:$0xff]
    %v376 = vld [vmem:[#allocation2 + $0x770] sm:$0xff]
    %v377 = vld [vmem:[#allocation2 + $0x778] sm:$0xff]
    %v378 = vld [vmem:[#allocation2 + $0x780] sm:$0xff]
    %v379 = vld [vmem:[#allocation2 + $0x788] sm:$0xff]
    %v380 = vld [vmem:[#allocation2 + $0x790] sm:$0xff]
    %v381 = vld [vmem:[#allocation2 + $0x798] sm:$0xff]
    %v382 = vld [vmem:[#allocation2 + $0x7a0] sm:$0xff]
    %v383 = vld [vmem:[#allocation2 + $0x7a8] sm:$0xff]
    %v384 = vld [vmem:[#allocation2 + $0x7b0] sm:$0xff]
    %v385 = vld [vmem:[#allocation2 + $0x7b8] sm:$0xff]
    %v386 = vld [vmem:[#allocation2 + $0x7c0] sm:$0xff]
    %v387 = vld [vmem:[#allocation2 + $0x7c8] sm:$0xff]
    %v388 = vld [vmem:[#allocation2 + $0x7d0] sm:$0xff]
    %v389 = vld [vmem:[#allocation2 + $0x7d8] sm:$0xff]
    %v390 = vld [vmem:[#allocation2 + $0x7e0] sm:$0xff]
    %v391 = vld [vmem:[#allocation2 + $0x7e8] sm:$0xff]
    %v392 = vld [vmem:[#allocation2 + $0x7f0] sm:$0xff]
    %v393 = vld [vmem:[#allocation2 + $0x7f8] sm:$0xff]
    %v394 = vld [vmem:[%s1] ss:$8 sm:$0xf]
    %v396 = vlaneseq
    %v397 = vshrl.u32 %v396, 7
    %v398 = vsub.s32 0, %v397
    %v399 = vrot.slane %v394, %v398
    %v400 = vlaneseq
    %v401 = vshrl.u32 %v400, 7
    %v402 = vsub.s32 1, %v401
    %v403 = vrot.slane %v394, %v402
    %v404 = vlaneseq
    %v405 = vshrl.u32 %v404, 7
    %v406 = vsub.s32 2, %v405
    %v407 = vrot.slane %v394, %v406
    %v408 = vlaneseq
    %v409 = vshrl.u32 %v408, 7
    %v410 = vsub.s32 3, %v409
    %v411 = vrot.slane %v394, %v410
    %v420 = vunpack.c.l.b16 %v134
    %v421 = vunpack.c.h.b16 %v134
    %v422 = vunpack.c.l.b16 %v135
    %v423 = vunpack.c.h.b16 %v135
    %v424 = vunpack.c.l.b16 %v136
    %v425 = vunpack.c.h.b16 %v136
    %v426 = vunpack.c.l.b16 %v137
    %v427 = vunpack.c.h.b16 %v137
    %v428 = vpack.c.b16 %v420, %v420
    %v429 = vpack.c.b16 %v421, %v421
    %v430 = vpack.c.b16 %v422, %v422
    %v431 = vpack.c.b16 %v423, %v423
    %v432 = vpack.c.b16 %v424, %v424
    %v433 = vpack.c.b16 %v425, %v425
    %v434 = vpack.c.b16 %v426, %v426
    %v435 = vpack.c.b16 %v427, %v427
    %v700 = vunpack.c.l.b16 %v138
    %v701 = vunpack.c.h.b16 %v138
    %v702 = vunpack.c.l.b16 %v139
    %v703 = vunpack.c.h.b16 %v139
    %v704 = vunpack.c.l.b16 %v140
    %v705 = vunpack.c.h.b16 %v140
    %v706 = vunpack.c.l.b16 %v141
    %v707 = vunpack.c.h.b16 %v141
    %v708 = vunpack.c.l.b16 %v142
    %v709 = vunpack.c.h.b16 %v142
    %v710 = vunpack.c.l.b16 %v143
    %v711 = vunpack.c.h.b16 %v143
    %v712 = vunpack.c.l.b16 %v144
    %v713 = vunpack.c.h.b16 %v144
    %v714 = vunpack.c.l.b16 %v145
    %v715 = vunpack.c.h.b16 %v145
    %v716 = vunpack.c.l.b16 %v146
    %v717 = vunpack.c.h.b16 %v146
    %v718 = vunpack.c.l.b16 %v147
    %v719 = vunpack.c.h.b16 %v147
    %v720 = vunpack.c.l.b16 %v148
    %v721 = vunpack.c.h.b16 %v148
    %v722 = vunpack.c.l.b16 %v149
    %v723 = vunpack.c.h.b16 %v149
    %v724 = vunpack.c.l.b16 %v150
    %v725 = vunpack.c.h.b16 %v150
    %v726 = vunpack.c.l.b16 %v151
    %v727 = vunpack.c.h.b16 %v151
    %v728 = vunpack.c.l.b16 %v152
    %v729 = vunpack.c.h.b16 %v152
    %v730 = vunpack.c.l.b16 %v153
    %v731 = vunpack.c.h.b16 %v153
    %v732 = vunpack.c.l.b16 %v154
    %v733 = vunpack.c.h.b16 %v154
    %v734 = vunpack.c.l.b16 %v155
    %v735 = vunpack.c.h.b16 %v155
    %v736 = vunpack.c.l.b16 %v156
    %v737 = vunpack.c.h.b16 %v156
    %v738 = vunpack.c.l.b16 %v157
    %v739 = vunpack.c.h.b16 %v157
    %v740 = vunpack.c.l.b16 %v158
    %v741 = vunpack.c.h.b16 %v158
    %v742 = vunpack.c.l.b16 %v159
    %v743 = vunpack.c.h.b16 %v159
    %v744 = vunpack.c.l.b16 %v160
    %v745 = vunpack.c.h.b16 %v160
    %v746 = vunpack.c.l.b16 %v161
    %v747 = vunpack.c.h.b16 %v161
    %v748 = vunpack.c.l.b16 %v162
    %v749 = vunpack.c.h.b16 %v162
    %v750 = vunpack.c.l.b16 %v163
    %v751 = vunpack.c.h.b16 %v163
    %v752 = vunpack.c.l.b16 %v164
    %v753 = vunpack.c.h.b16 %v164
    %v754 = vunpack.c.l.b16 %v165
    %v755 = vunpack.c.h.b16 %v165
    %v756 = vunpack.c.l.b16 %v166
    %v757 = vunpack.c.h.b16 %v166
    %v758 = vunpack.c.l.b16 %v167
    %v759 = vunpack.c.h.b16 %v167
    %v760 = vunpack.c.l.b16 %v168
    %v761 = vunpack.c.h.b16 %v168
    %v762 = vunpack.c.l.b16 %v169
    %v763 = vunpack.c.h.b16 %v169
    %v764 = vunpack.c.l.b16 %v170
    %v765 = vunpack.c.h.b16 %v170
    %v766 = vunpack.c.l.b16 %v171
    %v767 = vunpack.c.h.b16 %v171
    %v768 = vunpack.c.l.b16 %v172
    %v769 = vunpack.c.h.b16 %v172
    %v770 = vunpack.c.l.b16 %v173
    %v771 = vunpack.c.h.b16 %v173
    %v772 = vunpack.c.l.b16 %v174
    %v773 = vunpack.c.h.b16 %v174
    %v774 = vunpack.c.l.b16 %v175
    %v775 = vunpack.c.h.b16 %v175
    %v776 = vunpack.c.l.b16 %v176
    %v777 = vunpack.c.h.b16 %v176
    %v778 = vunpack.c.l.b16 %v177
    %v779 = vunpack.c.h.b16 %v177
    %v780 = vunpack.c.l.b16 %v178
    %v781 = vunpack.c.h.b16 %v178
    %v782 = vunpack.c.l.b16 %v179
    %v783 = vunpack.c.h.b16 %v179
    %v784 = vunpack.c.l.b16 %v180
    %v785 = vunpack.c.h.b16 %v180
    %v786 = vunpack.c.l.b16 %v181
    %v787 = vunpack.c.h.b16 %v181
    %v788 = vunpack.c.l.b16 %v182
    %v789 = vunpack.c.h.b16 %v182
    %v790 = vunpack.c.l.b16 %v183
    %v791 = vunpack.c.h.b16 %v183
    %v792 = vunpack.c.l.b16 %v184
    %v793 = vunpack.c.h.b16 %v184
    %v794 = vunpack.c.l.b16 %v185
    %v795 = vunpack.c.h.b16 %v185
    %v796 = vunpack.c.l.b16 %v186
    %v797 = vunpack.c.h.b16 %v186
    %v798 = vunpack.c.l.b16 %v187
    %v799 = vunpack.c.h.b16 %v187
    %v800 = vunpack.c.l.b16 %v188
    %v801 = vunpack.c.h.b16 %v188
    %v802 = vunpack.c.l.b16 %v189
    %v803 = vunpack.c.h.b16 %v189
    %v804 = vunpack.c.l.b16 %v190
    %v805 = vunpack.c.h.b16 %v190
    %v806 = vunpack.c.l.b16 %v191
    %v807 = vunpack.c.h.b16 %v191
    %v808 = vunpack.c.l.b16 %v192
    %v809 = vunpack.c.h.b16 %v192
    %v810 = vunpack.c.l.b16 %v193
    %v811 = vunpack.c.h.b16 %v193
    %v812 = vunpack.c.l.b16 %v194
    %v813 = vunpack.c.h.b16 %v194
    %v814 = vunpack.c.l.b16 %v195
    %v815 = vunpack.c.h.b16 %v195
    %v816 = vunpack.c.l.b16 %v196
    %v817 = vunpack.c.h.b16 %v196
    %v818 = vunpack.c.l.b16 %v197
    %v819 = vunpack.c.h.b16 %v197
    %v820 = vunpack.c.l.b16 %v198
    %v821 = vunpack.c.h.b16 %v198
    %v822 = vunpack.c.l.b16 %v199
    %v823 = vunpack.c.h.b16 %v199
    %v824 = vunpack.c.l.b16 %v200
    %v825 = vunpack.c.h.b16 %v200
    %v826 = vunpack.c.l.b16 %v201
    %v827 = vunpack.c.h.b16 %v201
    %v828 = vunpack.c.l.b16 %v202
    %v829 = vunpack.c.h.b16 %v202
    %v830 = vunpack.c.l.b16 %v203
    %v831 = vunpack.c.h.b16 %v203
    %v832 = vunpack.c.l.b16 %v204
    %v833 = vunpack.c.h.b16 %v204
    %v834 = vunpack.c.l.b16 %v205
    %v835 = vunpack.c.h.b16 %v205
    %v836 = vunpack.c.l.b16 %v206
    %v837 = vunpack.c.h.b16 %v206
    %v838 = vunpack.c.l.b16 %v207
    %v839 = vunpack.c.h.b16 %v207
    %v840 = vunpack.c.l.b16 %v208
    %v841 = vunpack.c.h.b16 %v208
    %v842 = vunpack.c.l.b16 %v209
    %v843 = vunpack.c.h.b16 %v209
    %v844 = vunpack.c.l.b16 %v210
    %v845 = vunpack.c.h.b16 %v210
    %v846 = vunpack.c.l.b16 %v211
    %v847 = vunpack.c.h.b16 %v211
    %v848 = vunpack.c.l.b16 %v212
    %v849 = vunpack.c.h.b16 %v212
    %v850 = vunpack.c.l.b16 %v213
    %v851 = vunpack.c.h.b16 %v213
    %v852 = vunpack.c.l.b16 %v214
    %v853 = vunpack.c.h.b16 %v214
    %v854 = vunpack.c.l.b16 %v215
    %v855 = vunpack.c.h.b16 %v215
    %v856 = vunpack.c.l.b16 %v216
    %v857 = vunpack.c.h.b16 %v216
    %v858 = vunpack.c.l.b16 %v217
    %v859 = vunpack.c.h.b16 %v217
    %v860 = vunpack.c.l.b16 %v218
    %v861 = vunpack.c.h.b16 %v218
    %v862 = vunpack.c.l.b16 %v219
    %v863 = vunpack.c.h.b16 %v219
    %v864 = vunpack.c.l.b16 %v220
    %v865 = vunpack.c.h.b16 %v220
    %v866 = vunpack.c.l.b16 %v221
    %v867 = vunpack.c.h.b16 %v221
    %v868 = vunpack.c.l.b16 %v222
    %v869 = vunpack.c.h.b16 %v222
    %v870 = vunpack.c.l.b16 %v223
    %v871 = vunpack.c.h.b16 %v223
    %v872 = vunpack.c.l.b16 %v224
    %v873 = vunpack.c.h.b16 %v224
    %v874 = vunpack.c.l.b16 %v225
    %v875 = vunpack.c.h.b16 %v225
    %v876 = vunpack.c.l.b16 %v226
    %v877 = vunpack.c.h.b16 %v226
    %v878 = vunpack.c.l.b16 %v227
    %v879 = vunpack.c.h.b16 %v227
    %v880 = vunpack.c.l.b16 %v228
    %v881 = vunpack.c.h.b16 %v228
    %v882 = vunpack.c.l.b16 %v229
    %v883 = vunpack.c.h.b16 %v229
    %v884 = vunpack.c.l.b16 %v230
    %v885 = vunpack.c.h.b16 %v230
    %v886 = vunpack.c.l.b16 %v231
    %v887 = vunpack.c.h.b16 %v231
    %v888 = vunpack.c.l.b16 %v232
    %v889 = vunpack.c.h.b16 %v232
    %v890 = vunpack.c.l.b16 %v233
    %v891 = vunpack.c.h.b16 %v233
    %v892 = vunpack.c.l.b16 %v234
    %v893 = vunpack.c.h.b16 %v234
    %v894 = vunpack.c.l.b16 %v235
    %v895 = vunpack.c.h.b16 %v235
    %v896 = vunpack.c.l.b16 %v236
    %v897 = vunpack.c.h.b16 %v236
    %v898 = vunpack.c.l.b16 %v237
    %v899 = vunpack.c.h.b16 %v237
    %v900 = vunpack.c.l.b16 %v238
    %v901 = vunpack.c.h.b16 %v238
    %v902 = vunpack.c.l.b16 %v239
    %v903 = vunpack.c.h.b16 %v239
    %v904 = vunpack.c.l.b16 %v240
    %v905 = vunpack.c.h.b16 %v240
    %v906 = vunpack.c.l.b16 %v241
    %v907 = vunpack.c.h.b16 %v241
    %v908 = vunpack.c.l.b16 %v242
    %v909 = vunpack.c.h.b16 %v242
    %v910 = vunpack.c.l.b16 %v243
    %v911 = vunpack.c.h.b16 %v243
    %v912 = vunpack.c.l.b16 %v244
    %v913 = vunpack.c.h.b16 %v244
    %v914 = vunpack.c.l.b16 %v245
    %v915 = vunpack.c.h.b16 %v245
    %v916 = vunpack.c.l.b16 %v246
    %v917 = vunpack.c.h.b16 %v246
    %v918 = vunpack.c.l.b16 %v247
    %v919 = vunpack.c.h.b16 %v247
    %v920 = vunpack.c.l.b16 %v248
    %v921 = vunpack.c.h.b16 %v248
    %v922 = vunpack.c.l.b16 %v249
    %v923 = vunpack.c.h.b16 %v249
    %v924 = vunpack.c.l.b16 %v250
    %v925 = vunpack.c.h.b16 %v250
    %v926 = vunpack.c.l.b16 %v251
    %v927 = vunpack.c.h.b16 %v251
    %v928 = vunpack.c.l.b16 %v252
    %v929 = vunpack.c.h.b16 %v252
    %v930 = vunpack.c.l.b16 %v253
    %v931 = vunpack.c.h.b16 %v253
    %v932 = vunpack.c.l.b16 %v254
    %v933 = vunpack.c.h.b16 %v254
    %v934 = vunpack.c.l.b16 %v255
    %v935 = vunpack.c.h.b16 %v255
    %v936 = vunpack.c.l.b16 %v256
    %v937 = vunpack.c.h.b16 %v256
    %v938 = vunpack.c.l.b16 %v257
    %v939 = vunpack.c.h.b16 %v257
    %v940 = vunpack.c.l.b16 %v258
    %v941 = vunpack.c.h.b16 %v258
    %v942 = vunpack.c.l.b16 %v259
    %v943 = vunpack.c.h.b16 %v259
    %v944 = vunpack.c.l.b16 %v260
    %v945 = vunpack.c.h.b16 %v260
    %v946 = vunpack.c.l.b16 %v261
    %v947 = vunpack.c.h.b16 %v261
    %v948 = vunpack.c.l.b16 %v262
    %v949 = vunpack.c.h.b16 %v262
    %v950 = vunpack.c.l.b16 %v263
    %v951 = vunpack.c.h.b16 %v263
    %v952 = vunpack.c.l.b16 %v264
    %v953 = vunpack.c.h.b16 %v264
    %v954 = vunpack.c.l.b16 %v265
    %v955 = vunpack.c.h.b16 %v265
    %v956 = vunpack.c.l.b16 %v266
    %v957 = vunpack.c.h.b16 %v266
    %v958 = vunpack.c.l.b16 %v267
    %v959 = vunpack.c.h.b16 %v267
    %v960 = vunpack.c.l.b16 %v268
    %v961 = vunpack.c.h.b16 %v268
    %v962 = vunpack.c.l.b16 %v269
    %v963 = vunpack.c.h.b16 %v269
    %v964 = vunpack.c.l.b16 %v270
    %v965 = vunpack.c.h.b16 %v270
    %v966 = vunpack.c.l.b16 %v271
    %v967 = vunpack.c.h.b16 %v271
    %v968 = vunpack.c.l.b16 %v272
    %v969 = vunpack.c.h.b16 %v272
    %v970 = vunpack.c.l.b16 %v273
    %v971 = vunpack.c.h.b16 %v273
    %v972 = vunpack.c.l.b16 %v274
    %v973 = vunpack.c.h.b16 %v274
    %v974 = vunpack.c.l.b16 %v275
    %v975 = vunpack.c.h.b16 %v275
    %v976 = vunpack.c.l.b16 %v276
    %v977 = vunpack.c.h.b16 %v276
    %v978 = vunpack.c.l.b16 %v277
    %v979 = vunpack.c.h.b16 %v277
    %v980 = vunpack.c.l.b16 %v278
    %v981 = vunpack.c.h.b16 %v278
    %v982 = vunpack.c.l.b16 %v279
    %v983 = vunpack.c.h.b16 %v279
    %v984 = vunpack.c.l.b16 %v280
    %v985 = vunpack.c.h.b16 %v280
    %v986 = vunpack.c.l.b16 %v281
    %v987 = vunpack.c.h.b16 %v281
    %v988 = vunpack.c.l.b16 %v282
    %v989 = vunpack.c.h.b16 %v282
    %v990 = vunpack.c.l.b16 %v283
    %v991 = vunpack.c.h.b16 %v283
    %v992 = vunpack.c.l.b16 %v284
    %v993 = vunpack.c.h.b16 %v284
    %v994 = vunpack.c.l.b16 %v285
    %v995 = vunpack.c.h.b16 %v285
    %v996 = vunpack.c.l.b16 %v286
    %v997 = vunpack.c.h.b16 %v286
    %v998 = vunpack.c.l.b16 %v287
    %v999 = vunpack.c.h.b16 %v287
    %v1000 = vunpack.c.l.b16 %v288
    %v1001 = vunpack.c.h.b16 %v288
    %v1002 = vunpack.c.l.b16 %v289
    %v1003 = vunpack.c.h.b16 %v289
    %v1004 = vunpack.c.l.b16 %v290
    %v1005 = vunpack.c.h.b16 %v290
    %v1006 = vunpack.c.l.b16 %v291
    %v1007 = vunpack.c.h.b16 %v291
    %v1008 = vunpack.c.l.b16 %v292
    %v1009 = vunpack.c.h.b16 %v292
    %v1010 = vunpack.c.l.b16 %v293
    %v1011 = vunpack.c.h.b16 %v293
    %v1012 = vunpack.c.l.b16 %v294
    %v1013 = vunpack.c.h.b16 %v294
    %v1014 = vunpack.c.l.b16 %v295
    %v1015 = vunpack.c.h.b16 %v295
    %v1016 = vunpack.c.l.b16 %v296
    %v1017 = vunpack.c.h.b16 %v296
    %v1018 = vunpack.c.l.b16 %v297
    %v1019 = vunpack.c.h.b16 %v297
    %v1020 = vunpack.c.l.b16 %v298
    %v1021 = vunpack.c.h.b16 %v298
    %v1022 = vunpack.c.l.b16 %v299
    %v1023 = vunpack.c.h.b16 %v299
    %v1024 = vunpack.c.l.b16 %v300
    %v1025 = vunpack.c.h.b16 %v300
    %v1026 = vunpack.c.l.b16 %v301
    %v1027 = vunpack.c.h.b16 %v301
    %v1028 = vunpack.c.l.b16 %v302
    %v1029 = vunpack.c.h.b16 %v302
    %v1030 = vunpack.c.l.b16 %v303
    %v1031 = vunpack.c.h.b16 %v303
    %v1032 = vunpack.c.l.b16 %v304
    %v1033 = vunpack.c.h.b16 %v304
    %v1034 = vunpack.c.l.b16 %v305
    %v1035 = vunpack.c.h.b16 %v305
    %v1036 = vunpack.c.l.b16 %v306
    %v1037 = vunpack.c.h.b16 %v306
    %v1038 = vunpack.c.l.b16 %v307
    %v1039 = vunpack.c.h.b16 %v307
    %v1040 = vunpack.c.l.b16 %v308
    %v1041 = vunpack.c.h.b16 %v308
    %v1042 = vunpack.c.l.b16 %v309
    %v1043 = vunpack.c.h.b16 %v309
    %v1044 = vunpack.c.l.b16 %v310
    %v1045 = vunpack.c.h.b16 %v310
    %v1046 = vunpack.c.l.b16 %v311
    %v1047 = vunpack.c.h.b16 %v311
    %v1048 = vunpack.c.l.b16 %v312
    %v1049 = vunpack.c.h.b16 %v312
    %v1050 = vunpack.c.l.b16 %v313
    %v1051 = vunpack.c.h.b16 %v313
    %v1052 = vunpack.c.l.b16 %v314
    %v1053 = vunpack.c.h.b16 %v314
    %v1054 = vunpack.c.l.b16 %v315
    %v1055 = vunpack.c.h.b16 %v315
    %v1056 = vunpack.c.l.b16 %v316
    %v1057 = vunpack.c.h.b16 %v316
    %v1058 = vunpack.c.l.b16 %v317
    %v1059 = vunpack.c.h.b16 %v317
    %v1060 = vunpack.c.l.b16 %v318
    %v1061 = vunpack.c.h.b16 %v318
    %v1062 = vunpack.c.l.b16 %v319
    %v1063 = vunpack.c.h.b16 %v319
    %v1064 = vunpack.c.l.b16 %v320
    %v1065 = vunpack.c.h.b16 %v320
    %v1066 = vunpack.c.l.b16 %v321
    %v1067 = vunpack.c.h.b16 %v321
    %v1068 = vunpack.c.l.b16 %v322
    %v1069 = vunpack.c.h.b16 %v322
    %v1070 = vunpack.c.l.b16 %v323
    %v1071 = vunpack.c.h.b16 %v323
    %v1072 = vunpack.c.l.b16 %v324
    %v1073 = vunpack.c.h.b16 %v324
    %v1074 = vunpack.c.l.b16 %v325
    %v1075 = vunpack.c.h.b16 %v325
    %v1076 = vunpack.c.l.b16 %v326
    %v1077 = vunpack.c.h.b16 %v326
    %v1078 = vunpack.c.l.b16 %v327
    %v1079 = vunpack.c.h.b16 %v327
    %v1080 = vunpack.c.l.b16 %v328
    %v1081 = vunpack.c.h.b16 %v328
    %v1082 = vunpack.c.l.b16 %v329
    %v1083 = vunpack.c.h.b16 %v329
    %v1084 = vunpack.c.l.b16 %v330
    %v1085 = vunpack.c.h.b16 %v330
    %v1086 = vunpack.c.l.b16 %v331
    %v1087 = vunpack.c.h.b16 %v331
    %v1088 = vunpack.c.l.b16 %v332
    %v1089 = vunpack.c.h.b16 %v332
    %v1090 = vunpack.c.l.b16 %v333
    %v1091 = vunpack.c.h.b16 %v333
    %v1092 = vunpack.c.l.b16 %v334
    %v1093 = vunpack.c.h.b16 %v334
    %v1094 = vunpack.c.l.b16 %v335
    %v1095 = vunpack.c.h.b16 %v335
    %v1096 = vunpack.c.l.b16 %v336
    %v1097 = vunpack.c.h.b16 %v336
    %v1098 = vunpack.c.l.b16 %v337
    %v1099 = vunpack.c.h.b16 %v337
    %v1100 = vunpack.c.l.b16 %v338
    %v1101 = vunpack.c.h.b16 %v338
    %v1102 = vunpack.c.l.b16 %v339
    %v1103 = vunpack.c.h.b16 %v339
    %v1104 = vunpack.c.l.b16 %v340
    %v1105 = vunpack.c.h.b16 %v340
    %v1106 = vunpack.c.l.b16 %v341
    %v1107 = vunpack.c.h.b16 %v341
    %v1108 = vunpack.c.l.b16 %v342
    %v1109 = vunpack.c.h.b16 %v342
    %v1110 = vunpack.c.l.b16 %v343
    %v1111 = vunpack.c.h.b16 %v343
    %v1112 = vunpack.c.l.b16 %v344
    %v1113 = vunpack.c.h.b16 %v344
    %v1114 = vunpack.c.l.b16 %v345
    %v1115 = vunpack.c.h.b16 %v345
    %v1116 = vunpack.c.l.b16 %v346
    %v1117 = vunpack.c.h.b16 %v346
    %v1118 = vunpack.c.l.b16 %v347
    %v1119 = vunpack.c.h.b16 %v347
    %v1120 = vunpack.c.l.b16 %v348
    %v1121 = vunpack.c.h.b16 %v348
    %v1122 = vunpack.c.l.b16 %v349
    %v1123 = vunpack.c.h.b16 %v349
    %v1124 = vunpack.c.l.b16 %v350
    %v1125 = vunpack.c.h.b16 %v350
    %v1126 = vunpack.c.l.b16 %v351
    %v1127 = vunpack.c.h.b16 %v351
    %v1128 = vunpack.c.l.b16 %v352
    %v1129 = vunpack.c.h.b16 %v352
    %v1130 = vunpack.c.l.b16 %v353
    %v1131 = vunpack.c.h.b16 %v353
    %v1132 = vunpack.c.l.b16 %v354
    %v1133 = vunpack.c.h.b16 %v354
    %v1134 = vunpack.c.l.b16 %v355
    %v1135 = vunpack.c.h.b16 %v355
    %v1136 = vunpack.c.l.b16 %v356
    %v1137 = vunpack.c.h.b16 %v356
    %v1138 = vunpack.c.l.b16 %v357
    %v1139 = vunpack.c.h.b16 %v357
    %v1140 = vunpack.c.l.b16 %v358
    %v1141 = vunpack.c.h.b16 %v358
    %v1142 = vunpack.c.l.b16 %v359
    %v1143 = vunpack.c.h.b16 %v359
    %v1144 = vunpack.c.l.b16 %v360
    %v1145 = vunpack.c.h.b16 %v360
    %v1146 = vunpack.c.l.b16 %v361
    %v1147 = vunpack.c.h.b16 %v361
    %v1148 = vunpack.c.l.b16 %v362
    %v1149 = vunpack.c.h.b16 %v362
    %v1150 = vunpack.c.l.b16 %v363
    %v1151 = vunpack.c.h.b16 %v363
    %v1152 = vunpack.c.l.b16 %v364
    %v1153 = vunpack.c.h.b16 %v364
    %v1154 = vunpack.c.l.b16 %v365
    %v1155 = vunpack.c.h.b16 %v365
    %v1156 = vunpack.c.l.b16 %v366
    %v1157 = vunpack.c.h.b16 %v366
    %v1158 = vunpack.c.l.b16 %v367
    %v1159 = vunpack.c.h.b16 %v367
    %v1160 = vunpack.c.l.b16 %v368
    %v1161 = vunpack.c.h.b16 %v368
    %v1162 = vunpack.c.l.b16 %v369
    %v1163 = vunpack.c.h.b16 %v369
    %v1164 = vunpack.c.l.b16 %v370
    %v1165 = vunpack.c.h.b16 %v370
    %v1166 = vunpack.c.l.b16 %v371
    %v1167 = vunpack.c.h.b16 %v371
    %v1168 = vunpack.c.l.b16 %v372
    %v1169 = vunpack.c.h.b16 %v372
    %v1170 = vunpack.c.l.b16 %v373
    %v1171 = vunpack.c.h.b16 %v373
    %v1172 = vunpack.c.l.b16 %v374
    %v1173 = vunpack.c.h.b16 %v374
    %v1174 = vunpack.c.l.b16 %v375
    %v1175 = vunpack.c.h.b16 %v375
    %v1176 = vunpack.c.l.b16 %v376
    %v1177 = vunpack.c.h.b16 %v376
    %v1178 = vunpack.c.l.b16 %v377
    %v1179 = vunpack.c.h.b16 %v377
    %v1180 = vunpack.c.l.b16 %v378
    %v1181 = vunpack.c.h.b16 %v378
    %v1182 = vunpack.c.l.b16 %v379
    %v1183 = vunpack.c.h.b16 %v379
    %v1184 = vunpack.c.l.b16 %v380
    %v1185 = vunpack.c.h.b16 %v380
    %v1186 = vunpack.c.l.b16 %v381
    %v1187 = vunpack.c.h.b16 %v381
    %v1188 = vunpack.c.l.b16 %v382
    %v1189 = vunpack.c.h.b16 %v382
    %v1190 = vunpack.c.l.b16 %v383
    %v1191 = vunpack.c.h.b16 %v383
    %v1192 = vunpack.c.l.b16 %v384
    %v1193 = vunpack.c.h.b16 %v384
    %v1194 = vunpack.c.l.b16 %v385
    %v1195 = vunpack.c.h.b16 %v385
    %v1196 = vunpack.c.l.b16 %v386
    %v1197 = vunpack.c.h.b16 %v386
    %v1198 = vunpack.c.l.b16 %v387
    %v1199 = vunpack.c.h.b16 %v387
    %v1200 = vunpack.c.l.b16 %v388
    %v1201 = vunpack.c.h.b16 %v388
    %v1202 = vunpack.c.l.b16 %v389
    %v1203 = vunpack.c.h.b16 %v389
    %v1204 = vunpack.c.l.b16 %v390
    %v1205 = vunpack.c.h.b16 %v390
    %v1206 = vunpack.c.l.b16 %v391
    %v1207 = vunpack.c.h.b16 %v391
    %v1208 = vunpack.c.l.b16 %v392
    %v1209 = vunpack.c.h.b16 %v392
    %v1210 = vunpack.c.l.b16 %v393
    %v1211 = vunpack.c.h.b16 %v393
    %v1212 = vpack.c.b16 %v704, %v700
    %v1213 = vpack.c.b16 %v705, %v701
    %v1214 = vpack.c.b16 %v706, %v702
    %v1215 = vpack.c.b16 %v707, %v703
    %v1216 = vpack.c.b16 %v712, %v708
    %v1217 = vpack.c.b16 %v713, %v709
    %v1218 = vpack.c.b16 %v714, %v710
    %v1219 = vpack.c.b16 %v715, %v711
    %v1220 = vpack.c.b16 %v720, %v716
    %v1221 = vpack.c.b16 %v721, %v717
    %v1222 = vpack.c.b16 %v722, %v718
    %v1223 = vpack.c.b16 %v723, %v719
    %v1224 = vpack.c.b16 %v728, %v724
    %v1225 = vpack.c.b16 %v729, %v725
    %v1226 = vpack.c.b16 %v730, %v726
    %v1227 = vpack.c.b16 %v731, %v727
    %v1228 = vpack.c.b16 %v736, %v732
    %v1229 = vpack.c.b16 %v737, %v733
    %v1230 = vpack.c.b16 %v738, %v734
    %v1231 = vpack.c.b16 %v739, %v735
    %v1232 = vpack.c.b16 %v744, %v740
    %v1233 = vpack.c.b16 %v745, %v741
    %v1234 = vpack.c.b16 %v746, %v742
    %v1235 = vpack.c.b16 %v747, %v743
    %v1236 = vpack.c.b16 %v752, %v748
    %v1237 = vpack.c.b16 %v753, %v749
    %v1238 = vpack.c.b16 %v754, %v750
    %v1239 = vpack.c.b16 %v755, %v751
    %v1240 = vpack.c.b16 %v760, %v756
    %v1241 = vpack.c.b16 %v761, %v757
    %v1242 = vpack.c.b16 %v762, %v758
    %v1243 = vpack.c.b16 %v763, %v759
    %v1244 = vpack.c.b16 %v768, %v764
    %v1245 = vpack.c.b16 %v769, %v765
    %v1246 = vpack.c.b16 %v770, %v766
    %v1247 = vpack.c.b16 %v771, %v767
    %v1248 = vpack.c.b16 %v776, %v772
    %v1249 = vpack.c.b16 %v777, %v773
    %v1250 = vpack.c.b16 %v778, %v774
    %v1251 = vpack.c.b16 %v779, %v775
    %v1252 = vpack.c.b16 %v784, %v780
    %v1253 = vpack.c.b16 %v785, %v781
    %v1254 = vpack.c.b16 %v786, %v782
    %v1255 = vpack.c.b16 %v787, %v783
    %v1256 = vpack.c.b16 %v792, %v788
    %v1257 = vpack.c.b16 %v793, %v789
    %v1258 = vpack.c.b16 %v794, %v790
    %v1259 = vpack.c.b16 %v795, %v791
    %v1260 = vpack.c.b16 %v800, %v796
    %v1261 = vpack.c.b16 %v801, %v797
    %v1262 = vpack.c.b16 %v802, %v798
    %v1263 = vpack.c.b16 %v803, %v799
    %v1264 = vpack.c.b16 %v808, %v804
    %v1265 = vpack.c.b16 %v809, %v805
    %v1266 = vpack.c.b16 %v810, %v806
    %v1267 = vpack.c.b16 %v811, %v807
    %v1268 = vpack.c.b16 %v816, %v812
    %v1269 = vpack.c.b16 %v817, %v813
    %v1270 = vpack.c.b16 %v818, %v814
    %v1271 = vpack.c.b16 %v819, %v815
    %v1272 = vpack.c.b16 %v824, %v820
    %v1273 = vpack.c.b16 %v825, %v821
    %v1274 = vpack.c.b16 %v826, %v822
    %v1275 = vpack.c.b16 %v827, %v823
    %v1276 = vpack.c.b16 %v832, %v828
    %v1277 = vpack.c.b16 %v833, %v829
    %v1278 = vpack.c.b16 %v834, %v830
    %v1279 = vpack.c.b16 %v835, %v831
    %v1280 = vpack.c.b16 %v840, %v836
    %v1281 = vpack.c.b16 %v841, %v837
    %v1282 = vpack.c.b16 %v842, %v838
    %v1283 = vpack.c.b16 %v843, %v839
    %v1284 = vpack.c.b16 %v848, %v844
    %v1285 = vpack.c.b16 %v849, %v845
    %v1286 = vpack.c.b16 %v850, %v846
    %v1287 = vpack.c.b16 %v851, %v847
    %v1288 = vpack.c.b16 %v856, %v852
    %v1289 = vpack.c.b16 %v857, %v853
    %v1290 = vpack.c.b16 %v858, %v854
    %v1291 = vpack.c.b16 %v859, %v855
    %v1292 = vpack.c.b16 %v864, %v860
    %v1293 = vpack.c.b16 %v865, %v861
    %v1294 = vpack.c.b16 %v866, %v862
    %v1295 = vpack.c.b16 %v867, %v863
    %v1296 = vpack.c.b16 %v872, %v868
    %v1297 = vpack.c.b16 %v873, %v869
    %v1298 = vpack.c.b16 %v874, %v870
    %v1299 = vpack.c.b16 %v875, %v871
    %v1300 = vpack.c.b16 %v880, %v876
    %v1301 = vpack.c.b16 %v881, %v877
    %v1302 = vpack.c.b16 %v882, %v878
    %v1303 = vpack.c.b16 %v883, %v879
    %v1304 = vpack.c.b16 %v888, %v884
    %v1305 = vpack.c.b16 %v889, %v885
    %v1306 = vpack.c.b16 %v890, %v886
    %v1307 = vpack.c.b16 %v891, %v887
    %v1308 = vpack.c.b16 %v896, %v892
    %v1309 = vpack.c.b16 %v897, %v893
    %v1310 = vpack.c.b16 %v898, %v894
    %v1311 = vpack.c.b16 %v899, %v895
    %v1312 = vpack.c.b16 %v904, %v900
    %v1313 = vpack.c.b16 %v905, %v901
    %v1314 = vpack.c.b16 %v906, %v902
    %v1315 = vpack.c.b16 %v907, %v903
    %v1316 = vpack.c.b16 %v912, %v908
    %v1317 = vpack.c.b16 %v913, %v909
    %v1318 = vpack.c.b16 %v914, %v910
    %v1319 = vpack.c.b16 %v915, %v911
    %v1320 = vpack.c.b16 %v920, %v916
    %v1321 = vpack.c.b16 %v921, %v917
    %v1322 = vpack.c.b16 %v922, %v918
    %v1323 = vpack.c.b16 %v923, %v919
    %v1324 = vpack.c.b16 %v928, %v924
    %v1325 = vpack.c.b16 %v929, %v925
    %v1326 = vpack.c.b16 %v930, %v926
    %v1327 = vpack.c.b16 %v931, %v927
    %v1328 = vpack.c.b16 %v936, %v932
    %v1329 = vpack.c.b16 %v937, %v933
    %v1330 = vpack.c.b16 %v938, %v934
    %v1331 = vpack.c.b16 %v939, %v935
    %v1332 = vpack.c.b16 %v944, %v940
    %v1333 = vpack.c.b16 %v945, %v941
    %v1334 = vpack.c.b16 %v946, %v942
    %v1335 = vpack.c.b16 %v947, %v943
    %v1336 = vpack.c.b16 %v952, %v948
    %v1337 = vpack.c.b16 %v953, %v949
    %v1338 = vpack.c.b16 %v954, %v950
    %v1339 = vpack.c.b16 %v955, %v951
    %v1340 = vpack.c.b16 %v960, %v956
    %v1341 = vpack.c.b16 %v961, %v957
    %v1342 = vpack.c.b16 %v962, %v958
    %v1343 = vpack.c.b16 %v963, %v959
    %v1344 = vpack.c.b16 %v968, %v964
    %v1345 = vpack.c.b16 %v969, %v965
    %v1346 = vpack.c.b16 %v970, %v966
    %v1347 = vpack.c.b16 %v971, %v967
    %v1348 = vpack.c.b16 %v976, %v972
    %v1349 = vpack.c.b16 %v977, %v973
    %v1350 = vpack.c.b16 %v978, %v974
    %v1351 = vpack.c.b16 %v979, %v975
    %v1352 = vpack.c.b16 %v984, %v980
    %v1353 = vpack.c.b16 %v985, %v981
    %v1354 = vpack.c.b16 %v986, %v982
    %v1355 = vpack.c.b16 %v987, %v983
    %v1356 = vpack.c.b16 %v992, %v988
    %v1357 = vpack.c.b16 %v993, %v989
    %v1358 = vpack.c.b16 %v994, %v990
    %v1359 = vpack.c.b16 %v995, %v991
    %v1360 = vpack.c.b16 %v1000, %v996
    %v1361 = vpack.c.b16 %v1001, %v997
    %v1362 = vpack.c.b16 %v1002, %v998
    %v1363 = vpack.c.b16 %v1003, %v999
    %v1364 = vpack.c.b16 %v1008, %v1004
    %v1365 = vpack.c.b16 %v1009, %v1005
    %v1366 = vpack.c.b16 %v1010, %v1006
    %v1367 = vpack.c.b16 %v1011, %v1007
    %v1368 = vpack.c.b16 %v1016, %v1012
    %v1369 = vpack.c.b16 %v1017, %v1013
    %v1370 = vpack.c.b16 %v1018, %v1014
    %v1371 = vpack.c.b16 %v1019, %v1015
    %v1372 = vpack.c.b16 %v1024, %v1020
    %v1373 = vpack.c.b16 %v1025, %v1021
    %v1374 = vpack.c.b16 %v1026, %v1022
    %v1375 = vpack.c.b16 %v1027, %v1023
    %v1376 = vpack.c.b16 %v1032, %v1028
    %v1377 = vpack.c.b16 %v1033, %v1029
    %v1378 = vpack.c.b16 %v1034, %v1030
    %v1379 = vpack.c.b16 %v1035, %v1031
    %v1380 = vpack.c.b16 %v1040, %v1036
    %v1381 = vpack.c.b16 %v1041, %v1037
    %v1382 = vpack.c.b16 %v1042, %v1038
    %v1383 = vpack.c.b16 %v1043, %v1039
    %v1384 = vpack.c.b16 %v1048, %v1044
    %v1385 = vpack.c.b16 %v1049, %v1045
    %v1386 = vpack.c.b16 %v1050, %v1046
    %v1387 = vpack.c.b16 %v1051, %v1047
    %v1388 = vpack.c.b16 %v1056, %v1052
    %v1389 = vpack.c.b16 %v1057, %v1053
    %v1390 = vpack.c.b16 %v1058, %v1054
    %v1391 = vpack.c.b16 %v1059, %v1055
    %v1392 = vpack.c.b16 %v1064, %v1060
    %v1393 = vpack.c.b16 %v1065, %v1061
    %v1394 = vpack.c.b16 %v1066, %v1062
    %v1395 = vpack.c.b16 %v1067, %v1063
    %v1396 = vpack.c.b16 %v1072, %v1068
    %v1397 = vpack.c.b16 %v1073, %v1069
    %v1398 = vpack.c.b16 %v1074, %v1070
    %v1399 = vpack.c.b16 %v1075, %v1071
    %v1400 = vpack.c.b16 %v1080, %v1076
    %v1401 = vpack.c.b16 %v1081, %v1077
    %v1402 = vpack.c.b16 %v1082, %v1078
    %v1403 = vpack.c.b16 %v1083, %v1079
    %v1404 = vpack.c.b16 %v1088, %v1084
    %v1405 = vpack.c.b16 %v1089, %v1085
    %v1406 = vpack.c.b16 %v1090, %v1086
    %v1407 = vpack.c.b16 %v1091, %v1087
    %v1408 = vpack.c.b16 %v1096, %v1092
    %v1409 = vpack.c.b16 %v1097, %v1093
    %v1410 = vpack.c.b16 %v1098, %v1094
    %v1411 = vpack.c.b16 %v1099, %v1095
    %v1412 = vpack.c.b16 %v1104, %v1100
    %v1413 = vpack.c.b16 %v1105, %v1101
    %v1414 = vpack.c.b16 %v1106, %v1102
    %v1415 = vpack.c.b16 %v1107, %v1103
    %v1416 = vpack.c.b16 %v1112, %v1108
    %v1417 = vpack.c.b16 %v1113, %v1109
    %v1418 = vpack.c.b16 %v1114, %v1110
    %v1419 = vpack.c.b16 %v1115, %v1111
    %v1420 = vpack.c.b16 %v1120, %v1116
    %v1421 = vpack.c.b16 %v1121, %v1117
    %v1422 = vpack.c.b16 %v1122, %v1118
    %v1423 = vpack.c.b16 %v1123, %v1119
    %v1424 = vpack.c.b16 %v1128, %v1124
    %v1425 = vpack.c.b16 %v1129, %v1125
    %v1426 = vpack.c.b16 %v1130, %v1126
    %v1427 = vpack.c.b16 %v1131, %v1127
    %v1428 = vpack.c.b16 %v1136, %v1132
    %v1429 = vpack.c.b16 %v1137, %v1133
    %v1430 = vpack.c.b16 %v1138, %v1134
    %v1431 = vpack.c.b16 %v1139, %v1135
    %v1432 = vpack.c.b16 %v1144, %v1140
    %v1433 = vpack.c.b16 %v1145, %v1141
    %v1434 = vpack.c.b16 %v1146, %v1142
    %v1435 = vpack.c.b16 %v1147, %v1143
    %v1436 = vpack.c.b16 %v1152, %v1148
    %v1437 = vpack.c.b16 %v1153, %v1149
    %v1438 = vpack.c.b16 %v1154, %v1150
    %v1439 = vpack.c.b16 %v1155, %v1151
    %v1440 = vpack.c.b16 %v1160, %v1156
    %v1441 = vpack.c.b16 %v1161, %v1157
    %v1442 = vpack.c.b16 %v1162, %v1158
    %v1443 = vpack.c.b16 %v1163, %v1159
    %v1444 = vpack.c.b16 %v1168, %v1164
    %v1445 = vpack.c.b16 %v1169, %v1165
    %v1446 = vpack.c.b16 %v1170, %v1166
    %v1447 = vpack.c.b16 %v1171, %v1167
    %v1448 = vpack.c.b16 %v1176, %v1172
    %v1449 = vpack.c.b16 %v1177, %v1173
    %v1450 = vpack.c.b16 %v1178, %v1174
    %v1451 = vpack.c.b16 %v1179, %v1175
    %v1452 = vpack.c.b16 %v1184, %v1180
    %v1453 = vpack.c.b16 %v1185, %v1181
    %v1454 = vpack.c.b16 %v1186, %v1182
    %v1455 = vpack.c.b16 %v1187, %v1183
    %v1456 = vpack.c.b16 %v1192, %v1188
    %v1457 = vpack.c.b16 %v1193, %v1189
    %v1458 = vpack.c.b16 %v1194, %v1190
    %v1459 = vpack.c.b16 %v1195, %v1191
    %v1460 = vpack.c.b16 %v1200, %v1196
    %v1461 = vpack.c.b16 %v1201, %v1197
    %v1462 = vpack.c.b16 %v1202, %v1198
    %v1463 = vpack.c.b16 %v1203, %v1199
    %v1464 = vpack.c.b16 %v1208, %v1204
    %v1465 = vpack.c.b16 %v1209, %v1205
    %v1466 = vpack.c.b16 %v1210, %v1206
    %v1467 = vpack.c.b16 %v1211, %v1207
    %1724 = vmatprep.subr.bf16.mxu0 %v1241
    %1725 = vmatpush1.bf16.msra.mxu0 %v1240
    %1726 = vmatprep.subr.bf16.mxu0 %v1237
    %1727 = vmatpush1.bf16.msra.mxu0 %v1236
    %1728 = vmatprep.subr.bf16.mxu0 %v1233
    %1729 = vmatpush1.bf16.msra.mxu0 %v1232
    %1730 = vmatprep.subr.bf16.mxu0 %v1229
    %1731 = vmatpush1.bf16.msra.mxu0 %v1228
    %1732 = vmatprep.subr.bf16.mxu0 %v1225
    %1733 = vmatpush1.bf16.msra.mxu0 %v1224
    %1734 = vmatprep.subr.bf16.mxu0 %v1221
    %1735 = vmatpush1.bf16.msra.mxu0 %v1220
    %1736 = vmatprep.subr.bf16.mxu0 %v1217
    %1737 = vmatpush1.bf16.msra.mxu0 %v1216
    %1738 = vmatprep.subr.bf16.mxu0 %v1213
    %1739 = vmatpush1.bf16.msra.mxu0 %v1212
    %1740 = vmatprep.subr.bf16.mxu0 %v1273
    %1741 = vmatpush2.bf16.msra.mxu0 %v1272
    %1742 = vmatprep.subr.bf16.mxu0 %v1269
    %1743 = vmatpush2.bf16.msra.mxu0 %v1268
    %1744 = vmatprep.subr.bf16.mxu0 %v1265
    %1745 = vmatpush2.bf16.msra.mxu0 %v1264
    %1746 = vmatprep.subr.bf16.mxu0 %v1261
    %1747 = vmatpush2.bf16.msra.mxu0 %v1260
    %1748 = vmatprep.subr.bf16.mxu0 %v1257
    %1749 = vmatpush2.bf16.msra.mxu0 %v1256
    %1750 = vmatprep.subr.bf16.mxu0 %v1253
    %1751 = vmatpush2.bf16.msra.mxu0 %v1252
    %1752 = vmatprep.subr.bf16.mxu0 %v1249
    %1753 = vmatpush2.bf16.msra.mxu0 %v1248
    %1754 = vmatprep.subr.bf16.mxu0 %v1245
    %1755 = vmatpush2.bf16.msra.mxu0 %v1244
    %1756 = vmatprep.mubr.bf16.mxu0 %v429
    %1757 = vmatmul.mubr.bf16.gmra.mxu0 %v428
    %v1758 = vpop.f32.mrf.mxu0
    %v1759 = vadd.f32 %v399, %v1758
    %v1760 = vpop.f32.mrf.mxu0
    %v1761 = vadd.f32 %v403, %v1760
    %v1762 = vpop.f32.mrf.mxu0
    %v1763 = vpop.f32.mrf.mxu0
    %1764 = vdwg.mxu0
    %1765 = vmatprep.subr.bf16.mxu0 %v1305
    %1766 = vmatpush1.bf16.msra.mxu0 %v1304
    %1767 = vmatprep.subr.bf16.mxu0 %v1301
    %1768 = vmatpush1.bf16.msra.mxu0 %v1300
    %1769 = vmatprep.subr.bf16.mxu0 %v1297
    %1770 = vmatpush1.bf16.msra.mxu0 %v1296
    %1771 = vmatprep.subr.bf16.mxu0 %v1293
    %1772 = vmatpush1.bf16.msra.mxu0 %v1292
    %1773 = vmatprep.subr.bf16.mxu0 %v1289
    %1774 = vmatpush1.bf16.msra.mxu0 %v1288
    %1775 = vmatprep.subr.bf16.mxu0 %v1285
    %1776 = vmatpush1.bf16.msra.mxu0 %v1284
    %1777 = vmatprep.subr.bf16.mxu0 %v1281
    %1778 = vmatpush1.bf16.msra.mxu0 %v1280
    %1779 = vmatprep.subr.bf16.mxu0 %v1277
    %1780 = vmatpush1.bf16.msra.mxu0 %v1276
    %1781 = vmatprep.subr.bf16.mxu0 %v1337
    %1782 = vmatpush2.bf16.msra.mxu0 %v1336
    %1783 = vmatprep.subr.bf16.mxu0 %v1333
    %1784 = vmatpush2.bf16.msra.mxu0 %v1332
    %1785 = vmatprep.subr.bf16.mxu0 %v1329
    %1786 = vmatpush2.bf16.msra.mxu0 %v1328
    %1787 = vmatprep.subr.bf16.mxu0 %v1325
    %1788 = vmatpush2.bf16.msra.mxu0 %v1324
    %1789 = vmatprep.subr.bf16.mxu0 %v1321
    %1790 = vmatpush2.bf16.msra.mxu0 %v1320
    %1791 = vmatprep.subr.bf16.mxu0 %v1317
    %1792 = vmatpush2.bf16.msra.mxu0 %v1316
    %1793 = vmatprep.subr.bf16.mxu0 %v1313
    %1794 = vmatpush2.bf16.msra.mxu0 %v1312
    %1795 = vmatprep.subr.bf16.mxu0 %v1309
    %1796 = vmatpush2.bf16.msra.mxu0 %v1308
    %1797 = vmatprep.mubr.bf16.mxu0 %v431
    %1798 = vmatmul.mubr.bf16.gmra.mxu0 %v430
    %v1799 = vpop.f32.mrf.mxu0
    %v1800 = vadd.f32 %v1759, %v1799
    %v1801 = vpop.f32.mrf.mxu0
    %v1802 = vadd.f32 %v1761, %v1801
    %v1803 = vpop.f32.mrf.mxu0
    %v1804 = vpop.f32.mrf.mxu0
    %1805 = vdwg.mxu0
    %1806 = vmatprep.subr.bf16.mxu0 %v1369
    %1807 = vmatpush1.bf16.msra.mxu0 %v1368
    %1808 = vmatprep.subr.bf16.mxu0 %v1365
    %1809 = vmatpush1.bf16.msra.mxu0 %v1364
    %1810 = vmatprep.subr.bf16.mxu0 %v1361
    %1811 = vmatpush1.bf16.msra.mxu0 %v1360
    %1812 = vmatprep.subr.bf16.mxu0 %v1357
    %1813 = vmatpush1.bf16.msra.mxu0 %v1356
    %1814 = vmatprep.subr.bf16.mxu0 %v1353
    %1815 = vmatpush1.bf16.msra.mxu0 %v1352
    %1816 = vmatprep.subr.bf16.mxu0 %v1349
    %1817 = vmatpush1.bf16.msra.mxu0 %v1348
    %1818 = vmatprep.subr.bf16.mxu0 %v1345
    %1819 = vmatpush1.bf16.msra.mxu0 %v1344
    %1820 = vmatprep.subr.bf16.mxu0 %v1341
    %1821 = vmatpush1.bf16.msra.mxu0 %v1340
    %1822 = vmatprep.subr.bf16.mxu0 %v1401
    %1823 = vmatpush2.bf16.msra.mxu0 %v1400
    %1824 = vmatprep.subr.bf16.mxu0 %v1397
    %1825 = vmatpush2.bf16.msra.mxu0 %v1396
    %1826 = vmatprep.subr.bf16.mxu0 %v1393
    %1827 = vmatpush2.bf16.msra.mxu0 %v1392
    %1828 = vmatprep.subr.bf16.mxu0 %v1389
    %1829 = vmatpush2.bf16.msra.mxu0 %v1388
    %1830 = vmatprep.subr.bf16.mxu0 %v1385
    %1831 = vmatpush2.bf16.msra.mxu0 %v1384
    %1832 = vmatprep.subr.bf16.mxu0 %v1381
    %1833 = vmatpush2.bf16.msra.mxu0 %v1380
    %1834 = vmatprep.subr.bf16.mxu0 %v1377
    %1835 = vmatpush2.bf16.msra.mxu0 %v1376
    %1836 = vmatprep.subr.bf16.mxu0 %v1373
    %1837 = vmatpush2.bf16.msra.mxu0 %v1372
    %1838 = vmatprep.mubr.bf16.mxu0 %v433
    %1839 = vmatmul.mubr.bf16.gmra.mxu0 %v432
    %v1840 = vpop.f32.mrf.mxu0
    %v1841 = vadd.f32 %v1800, %v1840
    %v1842 = vpop.f32.mrf.mxu0
    %v1843 = vadd.f32 %v1802, %v1842
    %v1844 = vpop.f32.mrf.mxu0
    %v1845 = vpop.f32.mrf.mxu0
    %1846 = vdwg.mxu0
    %1847 = vmatprep.subr.bf16.mxu0 %v1433
    %1848 = vmatpush1.bf16.msra.mxu0 %v1432
    %1849 = vmatprep.subr.bf16.mxu0 %v1429
    %1850 = vmatpush1.bf16.msra.mxu0 %v1428
    %1851 = vmatprep.subr.bf16.mxu0 %v1425
    %1852 = vmatpush1.bf16.msra.mxu0 %v1424
    %1853 = vmatprep.subr.bf16.mxu0 %v1421
    %1854 = vmatpush1.bf16.msra.mxu0 %v1420
    %1855 = vmatprep.subr.bf16.mxu0 %v1417
    %1856 = vmatpush1.bf16.msra.mxu0 %v1416
    %1857 = vmatprep.subr.bf16.mxu0 %v1413
    %1858 = vmatpush1.bf16.msra.mxu0 %v1412
    %1859 = vmatprep.subr.bf16.mxu0 %v1409
    %1860 = vmatpush1.bf16.msra.mxu0 %v1408
    %1861 = vmatprep.subr.bf16.mxu0 %v1405
    %1862 = vmatpush1.bf16.msra.mxu0 %v1404
    %1863 = vmatprep.subr.bf16.mxu0 %v1465
    %1864 = vmatpush2.bf16.msra.mxu0 %v1464
    %1865 = vmatprep.subr.bf16.mxu0 %v1461
    %1866 = vmatpush2.bf16.msra.mxu0 %v1460
    %1867 = vmatprep.subr.bf16.mxu0 %v1457
    %1868 = vmatpush2.bf16.msra.mxu0 %v1456
    %1869 = vmatprep.subr.bf16.mxu0 %v1453
    %1870 = vmatpush2.bf16.msra.mxu0 %v1452
    %1871 = vmatprep.subr.bf16.mxu0 %v1449
    %1872 = vmatpush2.bf16.msra.mxu0 %v1448
    %1873 = vmatprep.subr.bf16.mxu0 %v1445
    %1874 = vmatpush2.bf16.msra.mxu0 %v1444
    %1875 = vmatprep.subr.bf16.mxu0 %v1441
    %1876 = vmatpush2.bf16.msra.mxu0 %v1440
    %1877 = vmatprep.subr.bf16.mxu0 %v1437
    %1878 = vmatpush2.bf16.msra.mxu0 %v1436
    %1879 = vmatprep.mubr.bf16.mxu0 %v435
    %1880 = vmatmul.mubr.bf16.gmra.mxu0 %v434
    %v1881 = vpop.f32.mrf.mxu0
    %v1882 = vadd.f32 %v1841, %v1881
    %v1883 = vpop.f32.mrf.mxu0
    %v1884 = vadd.f32 %v1843, %v1883
    %v1885 = vpop.f32.mrf.mxu0
    %v1886 = vpop.f32.mrf.mxu0
    %1887 = vdwg.mxu0
    %1888 = vmatprep.subr.bf16.mxu0 %v1243
    %1889 = vmatpush1.bf16.msra.mxu0 %v1242
    %1890 = vmatprep.subr.bf16.mxu0 %v1239
    %1891 = vmatpush1.bf16.msra.mxu0 %v1238
    %1892 = vmatprep.subr.bf16.mxu0 %v1235
    %1893 = vmatpush1.bf16.msra.mxu0 %v1234
    %1894 = vmatprep.subr.bf16.mxu0 %v1231
    %1895 = vmatpush1.bf16.msra.mxu0 %v1230
    %1896 = vmatprep.subr.bf16.mxu0 %v1227
    %1897 = vmatpush1.bf16.msra.mxu0 %v1226
    %1898 = vmatprep.subr.bf16.mxu0 %v1223
    %1899 = vmatpush1.bf16.msra.mxu0 %v1222
    %1900 = vmatprep.subr.bf16.mxu0 %v1219
    %1901 = vmatpush1.bf16.msra.mxu0 %v1218
    %1902 = vmatprep.subr.bf16.mxu0 %v1215
    %1903 = vmatpush1.bf16.msra.mxu0 %v1214
    %1904 = vmatprep.subr.bf16.mxu0 %v1275
    %1905 = vmatpush2.bf16.msra.mxu0 %v1274
    %1906 = vmatprep.subr.bf16.mxu0 %v1271
    %1907 = vmatpush2.bf16.msra.mxu0 %v1270
    %1908 = vmatprep.subr.bf16.mxu0 %v1267
    %1909 = vmatpush2.bf16.msra.mxu0 %v1266
    %1910 = vmatprep.subr.bf16.mxu0 %v1263
    %1911 = vmatpush2.bf16.msra.mxu0 %v1262
    %1912 = vmatprep.subr.bf16.mxu0 %v1259
    %1913 = vmatpush2.bf16.msra.mxu0 %v1258
    %1914 = vmatprep.subr.bf16.mxu0 %v1255
    %1915 = vmatpush2.bf16.msra.mxu0 %v1254
    %1916 = vmatprep.subr.bf16.mxu0 %v1251
    %1917 = vmatpush2.bf16.msra.mxu0 %v1250
    %1918 = vmatprep.subr.bf16.mxu0 %v1247
    %1919 = vmatpush2.bf16.msra.mxu0 %v1246
    %1920 = vmatprep.mubr.bf16.mxu0 %v429
    %1921 = vmatmul.mubr.bf16.gmra.mxu0 %v428
    %v1922 = vpop.f32.mrf.mxu0
    %v1923 = vadd.f32 %v407, %v1922
    %v1924 = vpop.f32.mrf.mxu0
    %v1925 = vadd.f32 %v411, %v1924
    %v1926 = vpop.f32.mrf.mxu0
    %v1927 = vpop.f32.mrf.mxu0
    %1928 = vdwg.mxu0
    %1929 = vmatprep.subr.bf16.mxu0 %v1307
    %1930 = vmatpush1.bf16.msra.mxu0 %v1306
    %1931 = vmatprep.subr.bf16.mxu0 %v1303
    %1932 = vmatpush1.bf16.msra.mxu0 %v1302
    %1933 = vmatprep.subr.bf16.mxu0 %v1299
    %1934 = vmatpush1.bf16.msra.mxu0 %v1298
    %1935 = vmatprep.subr.bf16.mxu0 %v1295
    %1936 = vmatpush1.bf16.msra.mxu0 %v1294
    %1937 = vmatprep.subr.bf16.mxu0 %v1291
    %1938 = vmatpush1.bf16.msra.mxu0 %v1290
    %1939 = vmatprep.subr.bf16.mxu0 %v1287
    %1940 = vmatpush1.bf16.msra.mxu0 %v1286
    %1941 = vmatprep.subr.bf16.mxu0 %v1283
    %1942 = vmatpush1.bf16.msra.mxu0 %v1282
    %1943 = vmatprep.subr.bf16.mxu0 %v1279
    %1944 = vmatpush1.bf16.msra.mxu0 %v1278
    %1945 = vmatprep.subr.bf16.mxu0 %v1339
    %1946 = vmatpush2.bf16.msra.mxu0 %v1338
    %1947 = vmatprep.subr.bf16.mxu0 %v1335
    %1948 = vmatpush2.bf16.msra.mxu0 %v1334
    %1949 = vmatprep.subr.bf16.mxu0 %v1331
    %1950 = vmatpush2.bf16.msra.mxu0 %v1330
    %1951 = vmatprep.subr.bf16.mxu0 %v1327
    %1952 = vmatpush2.bf16.msra.mxu0 %v1326
    %1953 = vmatprep.subr.bf16.mxu0 %v1323
    %1954 = vmatpush2.bf16.msra.mxu0 %v1322
    %1955 = vmatprep.subr.bf16.mxu0 %v1319
    %1956 = vmatpush2.bf16.msra.mxu0 %v1318
    %1957 = vmatprep.subr.bf16.mxu0 %v1315
    %1958 = vmatpush2.bf16.msra.mxu0 %v1314
    %1959 = vmatprep.subr.bf16.mxu0 %v1311
    %1960 = vmatpush2.bf16.msra.mxu0 %v1310
    %1961 = vmatprep.mubr.bf16.mxu0 %v431
    %1962 = vmatmul.mubr.bf16.gmra.mxu0 %v430
    %v1963 = vpop.f32.mrf.mxu0
    %v1964 = vadd.f32 %v1923, %v1963
    %v1965 = vpop.f32.mrf.mxu0
    %v1966 = vadd.f32 %v1925, %v1965
    %v1967 = vpop.f32.mrf.mxu0
    %v1968 = vpop.f32.mrf.mxu0
    %1969 = vdwg.mxu0
    %1970 = vmatprep.subr.bf16.mxu0 %v1371
    %1971 = vmatpush1.bf16.msra.mxu0 %v1370
    %1972 = vmatprep.subr.bf16.mxu0 %v1367
    %1973 = vmatpush1.bf16.msra.mxu0 %v1366
    %1974 = vmatprep.subr.bf16.mxu0 %v1363
    %1975 = vmatpush1.bf16.msra.mxu0 %v1362
    %1976 = vmatprep.subr.bf16.mxu0 %v1359
    %1977 = vmatpush1.bf16.msra.mxu0 %v1358
    %1978 = vmatprep.subr.bf16.mxu0 %v1355
    %1979 = vmatpush1.bf16.msra.mxu0 %v1354
    %1980 = vmatprep.subr.bf16.mxu0 %v1351
    %1981 = vmatpush1.bf16.msra.mxu0 %v1350
    %1982 = vmatprep.subr.bf16.mxu0 %v1347
    %1983 = vmatpush1.bf16.msra.mxu0 %v1346
    %1984 = vmatprep.subr.bf16.mxu0 %v1343
    %1985 = vmatpush1.bf16.msra.mxu0 %v1342
    %1986 = vmatprep.subr.bf16.mxu0 %v1403
    %1987 = vmatpush2.bf16.msra.mxu0 %v1402
    %1988 = vmatprep.subr.bf16.mxu0 %v1399
    %1989 = vmatpush2.bf16.msra.mxu0 %v1398
    %1990 = vmatprep.subr.bf16.mxu0 %v1395
    %1991 = vmatpush2.bf16.msra.mxu0 %v1394
    %1992 = vmatprep.subr.bf16.mxu0 %v1391
    %1993 = vmatpush2.bf16.msra.mxu0 %v1390
    %1994 = vmatprep.subr.bf16.mxu0 %v1387
    %1995 = vmatpush2.bf16.msra.mxu0 %v1386
    %1996 = vmatprep.subr.bf16.mxu0 %v1383
    %1997 = vmatpush2.bf16.msra.mxu0 %v1382
    %1998 = vmatprep.subr.bf16.mxu0 %v1379
    %1999 = vmatpush2.bf16.msra.mxu0 %v1378
    %2000 = vmatprep.subr.bf16.mxu0 %v1375
    %2001 = vmatpush2.bf16.msra.mxu0 %v1374
    %2002 = vmatprep.mubr.bf16.mxu0 %v433
    %2003 = vmatmul.mubr.bf16.gmra.mxu0 %v432
    %v2004 = vpop.f32.mrf.mxu0
    %v2005 = vadd.f32 %v1964, %v2004
    %v2006 = vpop.f32.mrf.mxu0
    %v2007 = vadd.f32 %v1966, %v2006
    %v2008 = vpop.f32.mrf.mxu0
    %v2009 = vpop.f32.mrf.mxu0
    %2010 = vdwg.mxu0
    %2011 = vmatprep.subr.bf16.mxu0 %v1435
    %2012 = vmatpush1.bf16.msra.mxu0 %v1434
    %2013 = vmatprep.subr.bf16.mxu0 %v1431
    %2014 = vmatpush1.bf16.msra.mxu0 %v1430
    %2015 = vmatprep.subr.bf16.mxu0 %v1427
    %2016 = vmatpush1.bf16.msra.mxu0 %v1426
    %2017 = vmatprep.subr.bf16.mxu0 %v1423
    %2018 = vmatpush1.bf16.msra.mxu0 %v1422
    %2019 = vmatprep.subr.bf16.mxu0 %v1419
    %2020 = vmatpush1.bf16.msra.mxu0 %v1418
    %2021 = vmatprep.subr.bf16.mxu0 %v1415
    %2022 = vmatpush1.bf16.msra.mxu0 %v1414
    %2023 = vmatprep.subr.bf16.mxu0 %v1411
    %2024 = vmatpush1.bf16.msra.mxu0 %v1410
    %2025 = vmatprep.subr.bf16.mxu0 %v1407
    %2026 = vmatpush1.bf16.msra.mxu0 %v1406
    %2027 = vmatprep.subr.bf16.mxu0 %v1467
    %2028 = vmatpush2.bf16.msra.mxu0 %v1466
    %2029 = vmatprep.subr.bf16.mxu0 %v1463
    %2030 = vmatpush2.bf16.msra.mxu0 %v1462
    %2031 = vmatprep.subr.bf16.mxu0 %v1459
    %2032 = vmatpush2.bf16.msra.mxu0 %v1458
    %2033 = vmatprep.subr.bf16.mxu0 %v1455
    %2034 = vmatpush2.bf16.msra.mxu0 %v1454
    %2035 = vmatprep.subr.bf16.mxu0 %v1451
    %2036 = vmatpush2.bf16.msra.mxu0 %v1450
    %2037 = vmatprep.subr.bf16.mxu0 %v1447
    %2038 = vmatpush2.bf16.msra.mxu0 %v1446
    %2039 = vmatprep.subr.bf16.mxu0 %v1443
    %2040 = vmatpush2.bf16.msra.mxu0 %v1442
    %2041 = vmatprep.subr.bf16.mxu0 %v1439
    %2042 = vmatpush2.bf16.msra.mxu0 %v1438
    %2043 = vmatprep.mubr.bf16.mxu0 %v435
    %2044 = vmatmul.mubr.bf16.gmra.mxu0 %v434
    %v2045 = vpop.f32.mrf.mxu0
    %v2046 = vadd.f32 %v2005, %v2045
    %v2047 = vpop.f32.mrf.mxu0
    %v2048 = vadd.f32 %v2007, %v2047
    %v2049 = vpop.f32.mrf.mxu0
    %v2050 = vpop.f32.mrf.mxu0
    %2051 = vdwg.mxu0
    %v2052 = vmax.f32 %v1882, 0.0
    %v2053 = vmax.f32 %v1884, 0.0
    %v2054 = vmax.f32 %v2046, 0.0
    %v2055 = vmax.f32 %v2048, 0.0
    %v2056 = vpack.c.bf16 %v2052, %v2052
    %v2057 = vpack.c.bf16 %v2053, %v2053
    %v2058 = vpack.c.bf16 %v2054, %v2054
    %v2059 = vpack.c.bf16 %v2055, %v2055
    %v2060 = vld [vmem:[#allocation4] sm:$0xff]
    %v2061 = vld [vmem:[#allocation4 + $0x8] sm:$0xff]
    %v2062 = vld [vmem:[#allocation4 + $0x10] sm:$0xff]
    %v2063 = vld [vmem:[#allocation4 + $0x18] sm:$0xff]
    %v2064 = vld [vmem:[#allocation4 + $0x20] sm:$0xff]
    %v2065 = vld [vmem:[#allocation4 + $0x28] sm:$0xff]
    %v2066 = vld [vmem:[#allocation4 + $0x30] sm:$0xff]
    %v2067 = vld [vmem:[#allocation4 + $0x38] sm:$0xff]
    %v2068 = vld [vmem:[#allocation4 + $0x40] sm:$0xff]
    %v2069 = vld [vmem:[#allocation4 + $0x48] sm:$0xff]
    %v2070 = vld [vmem:[#allocation4 + $0x50] sm:$0xff]
    %v2071 = vld [vmem:[#allocation4 + $0x58] sm:$0xff]
    %v2072 = vld [vmem:[#allocation4 + $0x60] sm:$0xff]
    %v2073 = vld [vmem:[#allocation4 + $0x68] sm:$0xff]
    %v2074 = vld [vmem:[#allocation4 + $0x70] sm:$0xff]
    %v2075 = vld [vmem:[#allocation4 + $0x78] sm:$0xff]
    %v2076 = vld [vmem:[#allocation4 + $0x80] sm:$0xff]
    %v2077 = vld [vmem:[#allocation4 + $0x88] sm:$0xff]
    %v2078 = vld [vmem:[#allocation4 + $0x90] sm:$0xff]
    %v2079 = vld [vmem:[#allocation4 + $0x98] sm:$0xff]
    %v2080 = vld [vmem:[#allocation4 + $0xa0] sm:$0xff]
    %v2081 = vld [vmem:[#allocation4 + $0xa8] sm:$0xff]
    %v2082 = vld [vmem:[#allocation4 + $0xb0] sm:$0xff]
    %v2083 = vld [vmem:[#allocation4 + $0xb8] sm:$0xff]
    %v2084 = vld [vmem:[#allocation4 + $0xc0] sm:$0xff]
    %v2085 = vld [vmem:[#allocation4 + $0xc8] sm:$0xff]
    %v2086 = vld [vmem:[#allocation4 + $0xd0] sm:$0xff]
    %v2087 = vld [vmem:[#allocation4 + $0xd8] sm:$0xff]
    %v2088 = vld [vmem:[#allocation4 + $0xe0] sm:$0xff]
    %v2089 = vld [vmem:[#allocation4 + $0xe8] sm:$0xff]
    %v2090 = vld [vmem:[#allocation4 + $0xf0] sm:$0xff]
    %v2091 = vld [vmem:[#allocation4 + $0xf8] sm:$0xff]
    %v2092 = vld [vmem:[#allocation4 + $0x100] sm:$0xff]
    %v2093 = vld [vmem:[#allocation4 + $0x108] sm:$0xff]
    %v2094 = vld [vmem:[#allocation4 + $0x110] sm:$0xff]
    %v2095 = vld [vmem:[#allocation4 + $0x118] sm:$0xff]
    %v2096 = vld [vmem:[#allocation4 + $0x120] sm:$0xff]
    %v2097 = vld [vmem:[#allocation4 + $0x128] sm:$0xff]
    %v2098 = vld [vmem:[#allocation4 + $0x130] sm:$0xff]
    %v2099 = vld [vmem:[#allocation4 + $0x138] sm:$0xff]
    %v2100 = vld [vmem:[#allocation4 + $0x140] sm:$0xff]
    %v2101 = vld [vmem:[#allocation4 + $0x148] sm:$0xff]
    %v2102 = vld [vmem:[#allocation4 + $0x150] sm:$0xff]
    %v2103 = vld [vmem:[#allocation4 + $0x158] sm:$0xff]
    %v2104 = vld [vmem:[#allocation4 + $0x160] sm:$0xff]
    %v2105 = vld [vmem:[#allocation4 + $0x168] sm:$0xff]
    %v2106 = vld [vmem:[#allocation4 + $0x170] sm:$0xff]
    %v2107 = vld [vmem:[#allocation4 + $0x178] sm:$0xff]
    %v2108 = vld [vmem:[#allocation4 + $0x180] sm:$0xff]
    %v2109 = vld [vmem:[#allocation4 + $0x188] sm:$0xff]
    %v2110 = vld [vmem:[#allocation4 + $0x190] sm:$0xff]
    %v2111 = vld [vmem:[#allocation4 + $0x198] sm:$0xff]
    %v2112 = vld [vmem:[#allocation4 + $0x1a0] sm:$0xff]
    %v2113 = vld [vmem:[#allocation4 + $0x1a8] sm:$0xff]
    %v2114 = vld [vmem:[#allocation4 + $0x1b0] sm:$0xff]
    %v2115 = vld [vmem:[#allocation4 + $0x1b8] sm:$0xff]
    %v2116 = vld [vmem:[#allocation4 + $0x1c0] sm:$0xff]
    %v2117 = vld [vmem:[#allocation4 + $0x1c8] sm:$0xff]
    %v2118 = vld [vmem:[#allocation4 + $0x1d0] sm:$0xff]
    %v2119 = vld [vmem:[#allocation4 + $0x1d8] sm:$0xff]
    %v2120 = vld [vmem:[#allocation4 + $0x1e0] sm:$0xff]
    %v2121 = vld [vmem:[#allocation4 + $0x1e8] sm:$0xff]
    %v2122 = vld [vmem:[#allocation4 + $0x1f0] sm:$0xff]
    %v2123 = vld [vmem:[#allocation4 + $0x1f8] sm:$0xff]
    %s2124 = scalar_lea.vmem %s1, 1
    %v2125 = vld [vmem:[%s2124] ss:$8 sm:$0x3]
    %v2127 = vlaneseq
    %v2128 = vshrl.u32 %v2127, 7
    %v2129 = vsub.s32 0, %v2128
    %v2130 = vrot.slane %v2125, %v2129
    %v2131 = vlaneseq
    %v2132 = vshrl.u32 %v2131, 7
    %v2133 = vsub.s32 1, %v2132
    %v2134 = vrot.slane %v2125, %v2133
    %v2201 = vunpack.c.l.b16 %v2060
    %v2202 = vunpack.c.h.b16 %v2060
    %v2203 = vunpack.c.l.b16 %v2061
    %v2204 = vunpack.c.h.b16 %v2061
    %v2205 = vunpack.c.l.b16 %v2062
    %v2206 = vunpack.c.h.b16 %v2062
    %v2207 = vunpack.c.l.b16 %v2063
    %v2208 = vunpack.c.h.b16 %v2063
    %v2209 = vunpack.c.l.b16 %v2064
    %v2210 = vunpack.c.h.b16 %v2064
    %v2211 = vunpack.c.l.b16 %v2065
    %v2212 = vunpack.c.h.b16 %v2065
    %v2213 = vunpack.c.l.b16 %v2066
    %v2214 = vunpack.c.h.b16 %v2066
    %v2215 = vunpack.c.l.b16 %v2067
    %v2216 = vunpack.c.h.b16 %v2067
    %v2217 = vunpack.c.l.b16 %v2068
    %v2218 = vunpack.c.h.b16 %v2068
    %v2219 = vunpack.c.l.b16 %v2069
    %v2220 = vunpack.c.h.b16 %v2069
    %v2221 = vunpack.c.l.b16 %v2070
    %v2222 = vunpack.c.h.b16 %v2070
    %v2223 = vunpack.c.l.b16 %v2071
    %v2224 = vunpack.c.h.b16 %v2071
    %v2225 = vunpack.c.l.b16 %v2072
    %v2226 = vunpack.c.h.b16 %v2072
    %v2227 = vunpack.c.l.b16 %v2073
    %v2228 = vunpack.c.h.b16 %v2073
    %v2229 = vunpack.c.l.b16 %v2074
    %v2230 = vunpack.c.h.b16 %v2074
    %v2231 = vunpack.c.l.b16 %v2075
    %v2232 = vunpack.c.h.b16 %v2075
    %v2233 = vunpack.c.l.b16 %v2076
    %v2234 = vunpack.c.h.b16 %v2076
    %v2235 = vunpack.c.l.b16 %v2077
    %v2236 = vunpack.c.h.b16 %v2077
    %v2237 = vunpack.c.l.b16 %v2078
    %v2238 = vunpack.c.h.b16 %v2078
    %v2239 = vunpack.c.l.b16 %v2079
    %v2240 = vunpack.c.h.b16 %v2079
    %v2241 = vunpack.c.l.b16 %v2080
    %v2242 = vunpack.c.h.b16 %v2080
    %v2243 = vunpack.c.l.b16 %v2081
    %v2244 = vunpack.c.h.b16 %v2081
    %v2245 = vunpack.c.l.b16 %v2082
    %v2246 = vunpack.c.h.b16 %v2082
    %v2247 = vunpack.c.l.b16 %v2083
    %v2248 = vunpack.c.h.b16 %v2083
    %v2249 = vunpack.c.l.b16 %v2084
    %v2250 = vunpack.c.h.b16 %v2084
    %v2251 = vunpack.c.l.b16 %v2085
    %v2252 = vunpack.c.h.b16 %v2085
    %v2253 = vunpack.c.l.b16 %v2086
    %v2254 = vunpack.c.h.b16 %v2086
    %v2255 = vunpack.c.l.b16 %v2087
    %v2256 = vunpack.c.h.b16 %v2087
    %v2257 = vunpack.c.l.b16 %v2088
    %v2258 = vunpack.c.h.b16 %v2088
    %v2259 = vunpack.c.l.b16 %v2089
    %v2260 = vunpack.c.h.b16 %v2089
    %v2261 = vunpack.c.l.b16 %v2090
    %v2262 = vunpack.c.h.b16 %v2090
    %v2263 = vunpack.c.l.b16 %v2091
    %v2264 = vunpack.c.h.b16 %v2091
    %v2265 = vunpack.c.l.b16 %v2092
    %v2266 = vunpack.c.h.b16 %v2092
    %v2267 = vunpack.c.l.b16 %v2093
    %v2268 = vunpack.c.h.b16 %v2093
    %v2269 = vunpack.c.l.b16 %v2094
    %v2270 = vunpack.c.h.b16 %v2094
    %v2271 = vunpack.c.l.b16 %v2095
    %v2272 = vunpack.c.h.b16 %v2095
    %v2273 = vunpack.c.l.b16 %v2096
    %v2274 = vunpack.c.h.b16 %v2096
    %v2275 = vunpack.c.l.b16 %v2097
    %v2276 = vunpack.c.h.b16 %v2097
    %v2277 = vunpack.c.l.b16 %v2098
    %v2278 = vunpack.c.h.b16 %v2098
    %v2279 = vunpack.c.l.b16 %v2099
    %v2280 = vunpack.c.h.b16 %v2099
    %v2281 = vunpack.c.l.b16 %v2100
    %v2282 = vunpack.c.h.b16 %v2100
    %v2283 = vunpack.c.l.b16 %v2101
    %v2284 = vunpack.c.h.b16 %v2101
    %v2285 = vunpack.c.l.b16 %v2102
    %v2286 = vunpack.c.h.b16 %v2102
    %v2287 = vunpack.c.l.b16 %v2103
    %v2288 = vunpack.c.h.b16 %v2103
    %v2289 = vunpack.c.l.b16 %v2104
    %v2290 = vunpack.c.h.b16 %v2104
    %v2291 = vunpack.c.l.b16 %v2105
    %v2292 = vunpack.c.h.b16 %v2105
    %v2293 = vunpack.c.l.b16 %v2106
    %v2294 = vunpack.c.h.b16 %v2106
    %v2295 = vunpack.c.l.b16 %v2107
    %v2296 = vunpack.c.h.b16 %v2107
    %v2297 = vunpack.c.l.b16 %v2108
    %v2298 = vunpack.c.h.b16 %v2108
    %v2299 = vunpack.c.l.b16 %v2109
    %v2300 = vunpack.c.h.b16 %v2109
    %v2301 = vunpack.c.l.b16 %v2110
    %v2302 = vunpack.c.h.b16 %v2110
    %v2303 = vunpack.c.l.b16 %v2111
    %v2304 = vunpack.c.h.b16 %v2111
    %v2305 = vunpack.c.l.b16 %v2112
    %v2306 = vunpack.c.h.b16 %v2112
    %v2307 = vunpack.c.l.b16 %v2113
    %v2308 = vunpack.c.h.b16 %v2113
    %v2309 = vunpack.c.l.b16 %v2114
    %v2310 = vunpack.c.h.b16 %v2114
    %v2311 = vunpack.c.l.b16 %v2115
    %v2312 = vunpack.c.h.b16 %v2115
    %v2313 = vunpack.c.l.b16 %v2116
    %v2314 = vunpack.c.h.b16 %v2116
    %v2315 = vunpack.c.l.b16 %v2117
    %v2316 = vunpack.c.h.b16 %v2117
    %v2317 = vunpack.c.l.b16 %v2118
    %v2318 = vunpack.c.h.b16 %v2118
    %v2319 = vunpack.c.l.b16 %v2119
    %v2320 = vunpack.c.h.b16 %v2119
    %v2321 = vunpack.c.l.b16 %v2120
    %v2322 = vunpack.c.h.b16 %v2120
    %v2323 = vunpack.c.l.b16 %v2121
    %v2324 = vunpack.c.h.b16 %v2121
    %v2325 = vunpack.c.l.b16 %v2122
    %v2326 = vunpack.c.h.b16 %v2122
    %v2327 = vunpack.c.l.b16 %v2123
    %v2328 = vunpack.c.h.b16 %v2123
    %v2329 = vpack.c.b16 %v2203, %v2201
    %v2330 = vpack.c.b16 %v2204, %v2202
    %v2331 = vpack.c.b16 %v2207, %v2205
    %v2332 = vpack.c.b16 %v2208, %v2206
    %v2333 = vpack.c.b16 %v2211, %v2209
    %v2334 = vpack.c.b16 %v2212, %v2210
    %v2335 = vpack.c.b16 %v2215, %v2213
    %v2336 = vpack.c.b16 %v2216, %v2214
    %v2337 = vpack.c.b16 %v2219, %v2217
    %v2338 = vpack.c.b16 %v2220, %v2218
    %v2339 = vpack.c.b16 %v2223, %v2221
    %v2340 = vpack.c.b16 %v2224, %v2222
    %v2341 = vpack.c.b16 %v2227, %v2225
    %v2342 = vpack.c.b16 %v2228, %v2226
    %v2343 = vpack.c.b16 %v2231, %v2229
    %v2344 = vpack.c.b16 %v2232, %v2230
    %v2345 = vpack.c.b16 %v2235, %v2233
    %v2346 = vpack.c.b16 %v2236, %v2234
    %v2347 = vpack.c.b16 %v2239, %v2237
    %v2348 = vpack.c.b16 %v2240, %v2238
    %v2349 = vpack.c.b16 %v2243, %v2241
    %v2350 = vpack.c.b16 %v2244, %v2242
    %v2351 = vpack.c.b16 %v2247, %v2245
    %v2352 = vpack.c.b16 %v2248, %v2246
    %v2353 = vpack.c.b16 %v2251, %v2249
    %v2354 = vpack.c.b16 %v2252, %v2250
    %v2355 = vpack.c.b16 %v2255, %v2253
    %v2356 = vpack.c.b16 %v2256, %v2254
    %v2357 = vpack.c.b16 %v2259, %v2257
    %v2358 = vpack.c.b16 %v2260, %v2258
    %v2359 = vpack.c.b16 %v2263, %v2261
    %v2360 = vpack.c.b16 %v2264, %v2262
    %v2361 = vpack.c.b16 %v2267, %v2265
    %v2362 = vpack.c.b16 %v2268, %v2266
    %v2363 = vpack.c.b16 %v2271, %v2269
    %v2364 = vpack.c.b16 %v2272, %v2270
    %v2365 = vpack.c.b16 %v2275, %v2273
    %v2366 = vpack.c.b16 %v2276, %v2274
    %v2367 = vpack.c.b16 %v2279, %v2277
    %v2368 = vpack.c.b16 %v2280, %v2278
    %v2369 = vpack.c.b16 %v2283, %v2281
    %v2370 = vpack.c.b16 %v2284, %v2282
    %v2371 = vpack.c.b16 %v2287, %v2285
    %v2372 = vpack.c.b16 %v2288, %v2286
    %v2373 = vpack.c.b16 %v2291, %v2289
    %v2374 = vpack.c.b16 %v2292, %v2290
    %v2375 = vpack.c.b16 %v2295, %v2293
    %v2376 = vpack.c.b16 %v2296, %v2294
    %v2377 = vpack.c.b16 %v2299, %v2297
    %v2378 = vpack.c.b16 %v2300, %v2298
    %v2379 = vpack.c.b16 %v2303, %v2301
    %v2380 = vpack.c.b16 %v2304, %v2302
    %v2381 = vpack.c.b16 %v2307, %v2305
    %v2382 = vpack.c.b16 %v2308, %v2306
    %v2383 = vpack.c.b16 %v2311, %v2309
    %v2384 = vpack.c.b16 %v2312, %v2310
    %v2385 = vpack.c.b16 %v2315, %v2313
    %v2386 = vpack.c.b16 %v2316, %v2314
    %v2387 = vpack.c.b16 %v2319, %v2317
    %v2388 = vpack.c.b16 %v2320, %v2318
    %v2389 = vpack.c.b16 %v2323, %v2321
    %v2390 = vpack.c.b16 %v2324, %v2322
    %v2391 = vpack.c.b16 %v2327, %v2325
    %v2392 = vpack.c.b16 %v2328, %v2326
    %2457 = vmatprep.subr.bf16.mxu0 %v2344
    %2458 = vmatpush1.bf16.msra.mxu0 %v2343
    %2459 = vmatprep.subr.bf16.mxu0 %v2342
    %2460 = vmatpush1.bf16.msra.mxu0 %v2341
    %2461 = vmatprep.subr.bf16.mxu0 %v2340
    %2462 = vmatpush1.bf16.msra.mxu0 %v2339
    %2463 = vmatprep.subr.bf16.mxu0 %v2338
    %2464 = vmatpush1.bf16.msra.mxu0 %v2337
    %2465 = vmatprep.subr.bf16.mxu0 %v2336
    %2466 = vmatpush1.bf16.msra.mxu0 %v2335
    %2467 = vmatprep.subr.bf16.mxu0 %v2334
    %2468 = vmatpush1.bf16.msra.mxu0 %v2333
    %2469 = vmatprep.subr.bf16.mxu0 %v2332
    %2470 = vmatpush1.bf16.msra.mxu0 %v2331
    %2471 = vmatprep.subr.bf16.mxu0 %v2330
    %2472 = vmatpush1.bf16.msra.mxu0 %v2329
    %2473 = vmatprep.subr.bf16.mxu0 %v2360
    %2474 = vmatpush2.bf16.msra.mxu0 %v2359
    %2475 = vmatprep.subr.bf16.mxu0 %v2358
    %2476 = vmatpush2.bf16.msra.mxu0 %v2357
    %2477 = vmatprep.subr.bf16.mxu0 %v2356
    %2478 = vmatpush2.bf16.msra.mxu0 %v2355
    %2479 = vmatprep.subr.bf16.mxu0 %v2354
    %2480 = vmatpush2.bf16.msra.mxu0 %v2353
    %2481 = vmatprep.subr.bf16.mxu0 %v2352
    %2482 = vmatpush2.bf16.msra.mxu0 %v2351
    %2483 = vmatprep.subr.bf16.mxu0 %v2350
    %2484 = vmatpush2.bf16.msra.mxu0 %v2349
    %2485 = vmatprep.subr.bf16.mxu0 %v2348
    %2486 = vmatpush2.bf16.msra.mxu0 %v2347
    %2487 = vmatprep.subr.bf16.mxu0 %v2346
    %2488 = vmatpush2.bf16.msra.mxu0 %v2345
    %2489 = vmatprep.mubr.bf16.mxu0 %v2057
    %2490 = vmatmul.mubr.bf16.gmra.mxu0 %v2056
    %v2491 = vpop.f32.mrf.mxu0
    %v2492 = vadd.f32 %v2130, %v2491
    %v2493 = vpop.f32.mrf.mxu0
    %v2494 = vadd.f32 %v2134, %v2493
    %v2495 = vpop.f32.mrf.mxu0
    %v2496 = vpop.f32.mrf.mxu0
    %2497 = vdwg.mxu0
    %2498 = vmatprep.subr.bf16.mxu0 %v2376
    %2499 = vmatpush1.bf16.msra.mxu0 %v2375
    %2500 = vmatprep.subr.bf16.mxu0 %v2374
    %2501 = vmatpush1.bf16.msra.mxu0 %v2373
    %2502 = vmatprep.subr.bf16.mxu0 %v2372
    %2503 = vmatpush1.bf16.msra.mxu0 %v2371
    %2504 = vmatprep.subr.bf16.mxu0 %v2370
    %2505 = vmatpush1.bf16.msra.mxu0 %v2369
    %2506 = vmatprep.subr.bf16.mxu0 %v2368
    %2507 = vmatpush1.bf16.msra.mxu0 %v2367
    %2508 = vmatprep.subr.bf16.mxu0 %v2366
    %2509 = vmatpush1.bf16.msra.mxu0 %v2365
    %2510 = vmatprep.subr.bf16.mxu0 %v2364
    %2511 = vmatpush1.bf16.msra.mxu0 %v2363
    %2512 = vmatprep.subr.bf16.mxu0 %v2362
    %2513 = vmatpush1.bf16.msra.mxu0 %v2361
    %2514 = vmatprep.subr.bf16.mxu0 %v2392
    %2515 = vmatpush2.bf16.msra.mxu0 %v2391
    %2516 = vmatprep.subr.bf16.mxu0 %v2390
    %2517 = vmatpush2.bf16.msra.mxu0 %v2389
    %2518 = vmatprep.subr.bf16.mxu0 %v2388
    %2519 = vmatpush2.bf16.msra.mxu0 %v2387
    %2520 = vmatprep.subr.bf16.mxu0 %v2386
    %2521 = vmatpush2.bf16.msra.mxu0 %v2385
    %2522 = vmatprep.subr.bf16.mxu0 %v2384
    %2523 = vmatpush2.bf16.msra.mxu0 %v2383
    %2524 = vmatprep.subr.bf16.mxu0 %v2382
    %2525 = vmatpush2.bf16.msra.mxu0 %v2381
    %2526 = vmatprep.subr.bf16.mxu0 %v2380
    %2527 = vmatpush2.bf16.msra.mxu0 %v2379
    %2528 = vmatprep.subr.bf16.mxu0 %v2378
    %2529 = vmatpush2.bf16.msra.mxu0 %v2377
    %2530 = vmatprep.mubr.bf16.mxu0 %v2059
    %2531 = vmatmul.mubr.bf16.gmra.mxu0 %v2058
    %v2532 = vpop.f32.mrf.mxu0
    %v2533 = vadd.f32 %v2492, %v2532
    %v2534 = vpop.f32.mrf.mxu0
    %v2535 = vadd.f32 %v2494, %v2534
    %v2536 = vpop.f32.mrf.mxu0
    %v2537 = vpop.f32.mrf.mxu0
    %2538 = vdwg.mxu0
    %v2539 = vmax.f32 %v2533, 0.0
    %v2540 = vmax.f32 %v2535, 0.0
    %v2541 = vpack.c.bf16 %v2539, %v2539
    %v2542 = vpack.c.bf16 %v2540, %v2540
    %v2543 = vld [vmem:[%s4] sm:$0xf]
    %v2544 = vld [vmem:[%s4 + $0x4] sm:$0xf]
    %v2545 = vld [vmem:[%s4 + $0x8] sm:$0xf]
    %v2546 = vld [vmem:[%s4 + $0xc] sm:$0xf]
    %v2547 = vld [vmem:[%s4 + $0x10] sm:$0xf]
    %v2548 = vld [vmem:[%s4 + $0x14] sm:$0xf]
    %v2549 = vld [vmem:[%s4 + $0x18] sm:$0xf]
    %v2550 = vld [vmem:[%s4 + $0x1c] sm:$0xf]
    %v2551 = vld [vmem:[%s4 + $0x20] sm:$0xf]
    %v2552 = vld [vmem:[%s4 + $0x24] sm:$0xf]
    %v2553 = vld [vmem:[%s4 + $0x28] sm:$0xf]
    %v2554 = vld [vmem:[%s4 + $0x2c] sm:$0xf]
    %v2555 = vld [vmem:[%s4 + $0x30] sm:$0xf]
    %v2556 = vld [vmem:[%s4 + $0x34] sm:$0xf]
    %v2557 = vld [vmem:[%s4 + $0x38] sm:$0xf]
    %v2558 = vld [vmem:[%s4 + $0x3c] sm:$0xf]
    %v2559 = vld [vmem:[%s4 + $0x40] sm:$0xf]
    %v2560 = vld [vmem:[%s4 + $0x44] sm:$0xf]
    %v2561 = vld [vmem:[%s4 + $0x48] sm:$0xf]
    %v2562 = vld [vmem:[%s4 + $0x4c] sm:$0xf]
    %v2563 = vld [vmem:[%s4 + $0x50] sm:$0xf]
    %v2564 = vld [vmem:[%s4 + $0x54] sm:$0xf]
    %v2565 = vld [vmem:[%s4 + $0x58] sm:$0xf]
    %v2566 = vld [vmem:[%s4 + $0x5c] sm:$0xf]
    %v2567 = vld [vmem:[%s4 + $0x60] sm:$0xf]
    %v2568 = vld [vmem:[%s4 + $0x64] sm:$0xf]
    %v2569 = vld [vmem:[%s4 + $0x68] sm:$0xf]
    %v2570 = vld [vmem:[%s4 + $0x6c] sm:$0xf]
    %v2571 = vld [vmem:[%s4 + $0x70] sm:$0xf]
    %v2572 = vld [vmem:[%s4 + $0x74] sm:$0xf]
    %v2573 = vld [vmem:[%s4 + $0x78] sm:$0xf]
    %v2574 = vld [vmem:[%s4 + $0x7c] sm:$0xf]
    %v2575 = vld [vmem:[%s1 + $0x2] ss:$0 sm:$0xff]
    %v2608 = vunpack.c.l.b16 %v2543
    %v2609 = vunpack.c.l.b16 %v2544
    %v2610 = vunpack.c.l.b16 %v2545
    %v2611 = vunpack.c.l.b16 %v2546
    %v2612 = vunpack.c.l.b16 %v2547
    %v2613 = vunpack.c.l.b16 %v2548
    %v2614 = vunpack.c.l.b16 %v2549
    %v2615 = vunpack.c.l.b16 %v2550
    %v2616 = vunpack.c.l.b16 %v2551
    %v2617 = vunpack.c.l.b16 %v2552
    %v2618 = vunpack.c.l.b16 %v2553
    %v2619 = vunpack.c.l.b16 %v2554
    %v2620 = vunpack.c.l.b16 %v2555
    %v2621 = vunpack.c.l.b16 %v2556
    %v2622 = vunpack.c.l.b16 %v2557
    %v2623 = vunpack.c.l.b16 %v2558
    %v2624 = vunpack.c.l.b16 %v2559
    %v2625 = vunpack.c.l.b16 %v2560
    %v2626 = vunpack.c.l.b16 %v2561
    %v2627 = vunpack.c.l.b16 %v2562
    %v2628 = vunpack.c.l.b16 %v2563
    %v2629 = vunpack.c.l.b16 %v2564
    %v2630 = vunpack.c.l.b16 %v2565
    %v2631 = vunpack.c.l.b16 %v2566
    %v2632 = vunpack.c.l.b16 %v2567
    %v2633 = vunpack.c.l.b16 %v2568
    %v2634 = vunpack.c.l.b16 %v2569
    %v2635 = vunpack.c.l.b16 %v2570
    %v2636 = vunpack.c.l.b16 %v2571
    %v2637 = vunpack.c.l.b16 %v2572
    %v2638 = vunpack.c.l.b16 %v2573
    %v2639 = vunpack.c.l.b16 %v2574
    %v2640 = vpack.c.b16 %v2609, %v2608
    %v2641 = vpack.c.b16 %v2611, %v2610
    %v2642 = vpack.c.b16 %v2613, %v2612
    %v2643 = vpack.c.b16 %v2615, %v2614
    %v2644 = vpack.c.b16 %v2617, %v2616
    %v2645 = vpack.c.b16 %v2619, %v2618
    %v2646 = vpack.c.b16 %v2621, %v2620
    %v2647 = vpack.c.b16 %v2623, %v2622
    %v2648 = vpack.c.b16 %v2625, %v2624
    %v2649 = vpack.c.b16 %v2627, %v2626
    %v2650 = vpack.c.b16 %v2629, %v2628
    %v2651 = vpack.c.b16 %v2631, %v2630
    %v2652 = vpack.c.b16 %v2633, %v2632
    %v2653 = vpack.c.b16 %v2635, %v2634
    %v2654 = vpack.c.b16 %v2637, %v2636
    %v2655 = vpack.c.b16 %v2639, %v2638
    %2672 = vmatprep.subr.bf16.mxu0 0
    %2673 = vmatpush1.bf16.msra.mxu0 %v2647
    %2674 = vmatprep.subr.bf16.mxu0 0
    %2675 = vmatpush1.bf16.msra.mxu0 %v2646
    %2676 = vmatprep.subr.bf16.mxu0 0
    %2677 = vmatpush1.bf16.msra.mxu0 %v2645
    %2678 = vmatprep.subr.bf16.mxu0 0
    %2679 = vmatpush1.bf16.msra.mxu0 %v2644
    %2680 = vmatprep.subr.bf16.mxu0 0
    %2681 = vmatpush1.bf16.msra.mxu0 %v2643
    %2682 = vmatprep.subr.bf16.mxu0 0
    %2683 = vmatpush1.bf16.msra.mxu0 %v2642
    %2684 = vmatprep.subr.bf16.mxu0 0
    %2685 = vmatpush1.bf16.msra.mxu0 %v2641
    %2686 = vmatprep.subr.bf16.mxu0 0
    %2687 = vmatpush1.bf16.msra.mxu0 %v2640
    %2688 = vmatprep.subr.bf16.mxu0 0
    %2689 = vmatpush2.bf16.msra.mxu0 %v2655
    %2690 = vmatprep.subr.bf16.mxu0 0
    %2691 = vmatpush2.bf16.msra.mxu0 %v2654
    %2692 = vmatprep.subr.bf16.mxu0 0
    %2693 = vmatpush2.bf16.msra.mxu0 %v2653
    %2694 = vmatprep.subr.bf16.mxu0 0
    %2695 = vmatpush2.bf16.msra.mxu0 %v2652
    %2696 = vmatprep.subr.bf16.mxu0 0
    %2697 = vmatpush2.bf16.msra.mxu0 %v2651
    %2698 = vmatprep.subr.bf16.mxu0 0
    %2699 = vmatpush2.bf16.msra.mxu0 %v2650
    %2700 = vmatprep.subr.bf16.mxu0 0
    %2701 = vmatpush2.bf16.msra.mxu0 %v2649
    %2702 = vmatprep.subr.bf16.mxu0 0
    %2703 = vmatpush2.bf16.msra.mxu0 %v2648
    %2704 = vmatprep.mubr.bf16.mxu0 %v2542
    %2705 = vmatmul.mubr.bf16.gmra.mxu0 %v2541
    %v2706 = vpop.f32.mrf.mxu0
    %v2707 = vadd.f32 %v2575, %v2706
    %v2708 = vpop.f32.mrf.mxu0
    %v2709 = vpop.f32.mrf.mxu0
    %v2710 = vpop.f32.mrf.mxu0
    %2711 = vdwg.mxu0
    %v2712 = vmax.f32 %v2707, 0.0
    %v2713 = vpack.c.bf16 %v2712, %v2712
    %v2714 = vld [vmem:[%s5] sm:$0xf]
    %v2715 = vld [vmem:[%s5 + $0x4] sm:$0xf]
    %v2716 = vld [vmem:[%s5 + $0x8] sm:$0xf]
    %v2717 = vld [vmem:[%s5 + $0xc] sm:$0xf]
    %v2718 = vld [vmem:[%s5 + $0x10] sm:$0xf]
    %v2719 = vld [vmem:[%s5 + $0x14] sm:$0xf]
    %v2720 = vld [vmem:[%s5 + $0x18] sm:$0xf]
    %v2721 = vld [vmem:[%s5 + $0x1c] sm:$0xf]
    %v2722 = vld [vmem:[%s5 + $0x20] sm:$0xf]
    %v2723 = vld [vmem:[%s5 + $0x24] sm:$0xf]
    %v2724 = vld [vmem:[%s5 + $0x28] sm:$0xf]
    %v2725 = vld [vmem:[%s5 + $0x2c] sm:$0xf]
    %v2726 = vld [vmem:[%s5 + $0x30] sm:$0xf]
    %v2727 = vld [vmem:[%s5 + $0x34] sm:$0xf]
    %v2728 = vld [vmem:[%s5 + $0x38] sm:$0xf]
    %v2729 = vld [vmem:[%s5 + $0x3c] sm:$0xf]
    %v2730 = vld [vmem:[%s1 + $0x3] ss:$0 sm:$0xff]
    %v2747 = vunpack.c.l.b16 %v2714
    %v2748 = vunpack.c.l.b16 %v2715
    %v2749 = vunpack.c.l.b16 %v2716
    %v2750 = vunpack.c.l.b16 %v2717
    %v2751 = vunpack.c.l.b16 %v2718
    %v2752 = vunpack.c.l.b16 %v2719
    %v2753 = vunpack.c.l.b16 %v2720
    %v2754 = vunpack.c.l.b16 %v2721
    %v2755 = vunpack.c.l.b16 %v2722
    %v2756 = vunpack.c.l.b16 %v2723
    %v2757 = vunpack.c.l.b16 %v2724
    %v2758 = vunpack.c.l.b16 %v2725
    %v2759 = vunpack.c.l.b16 %v2726
    %v2760 = vunpack.c.l.b16 %v2727
    %v2761 = vunpack.c.l.b16 %v2728
    %v2762 = vunpack.c.l.b16 %v2729
    %v2763 = vpack.c.b16 %v2748, %v2747
    %v2764 = vpack.c.b16 %v2750, %v2749
    %v2765 = vpack.c.b16 %v2752, %v2751
    %v2766 = vpack.c.b16 %v2754, %v2753
    %v2767 = vpack.c.b16 %v2756, %v2755
    %v2768 = vpack.c.b16 %v2758, %v2757
    %v2769 = vpack.c.b16 %v2760, %v2759
    %v2770 = vpack.c.b16 %v2762, %v2761
    %2779 = vmatprep.subr.bf16.mxu0 0
    %2780 = vmatpush1.bf16.msra.mxu0 %v2770
    %2781 = vmatprep.subr.bf16.mxu0 0
    %2782 = vmatpush1.bf16.msra.mxu0 %v2769
    %2783 = vmatprep.subr.bf16.mxu0 0
    %2784 = vmatpush1.bf16.msra.mxu0 %v2768
    %2785 = vmatprep.subr.bf16.mxu0 0
    %2786 = vmatpush1.bf16.msra.mxu0 %v2767
    %2787 = vmatprep.subr.bf16.mxu0 0
    %2788 = vmatpush1.bf16.msra.mxu0 %v2766
    %2789 = vmatprep.subr.bf16.mxu0 0
    %2790 = vmatpush1.bf16.msra.mxu0 %v2765
    %2791 = vmatprep.subr.bf16.mxu0 0
    %2792 = vmatpush1.bf16.msra.mxu0 %v2764
    %2793 = vmatprep.subr.bf16.mxu0 0
    %2794 = vmatpush1.bf16.msra.mxu0 %v2763
    %2795 = vmatprep.subr.bf16.mxu0 0
    %2796 = vmatpush2.bf16.msra.mxu0 0
    %2797 = vmatprep.subr.bf16.mxu0 0
    %2798 = vmatpush2.bf16.msra.mxu0 0
    %2799 = vmatprep.subr.bf16.mxu0 0
    %2800 = vmatpush2.bf16.msra.mxu0 0
    %2801 = vmatprep.subr.bf16.mxu0 0
    %2802 = vmatpush2.bf16.msra.mxu0 0
    %2803 = vmatprep.subr.bf16.mxu0 0
    %2804 = vmatpush2.bf16.msra.mxu0 0
    %2805 = vmatprep.subr.bf16.mxu0 0
    %2806 = vmatpush2.bf16.msra.mxu0 0
    %2807 = vmatprep.subr.bf16.mxu0 0
    %2808 = vmatpush2.bf16.msra.mxu0 0
    %2809 = vmatprep.subr.bf16.mxu0 0
    %2810 = vmatpush2.bf16.msra.mxu0 0
    %2811 = vmatprep.mubr.bf16.mxu0 0
    %2812 = vmatmul.mubr.bf16.gmra.mxu0 %v2713
    %v2813 = vpop.f32.mrf.mxu0
    %v2814 = vadd.f32 %v2730, %v2813
    %v2815 = vpop.f32.mrf.mxu0
    %v2816 = vpop.f32.mrf.mxu0
    %v2817 = vpop.f32.mrf.mxu0
    %2818 = vdwg.mxu0
    %v2819 = vmax.f32 %v2814, 0.0
    %v2820 = vpack.c.bf16 %v2819, %v2819
    %v2821 = vld [vmem:[#allocation6] sm:$0xf]
    %v2822 = vld [vmem:[#allocation6 + $0x4] sm:$0xf]
    %v2823 = vld [vmem:[#allocation6 + $0x8] sm:$0xf]
    %v2824 = vld [vmem:[#allocation6 + $0xc] sm:$0xf]
    %v2825 = vld [vmem:[#allocation6 + $0x10] sm:$0xf]
    %v2826 = vld [vmem:[#allocation6 + $0x14] sm:$0xf]
    %v2827 = vld [vmem:[#allocation6 + $0x18] sm:$0xf]
    %v2828 = vld [vmem:[#allocation6 + $0x1c] sm:$0xf]
    %v2829 = vld [vmem:[#allocation6 + $0x20] sm:$0xf]
    %v2830 = vld [vmem:[#allocation6 + $0x24] sm:$0xf]
    %v2831 = vld [vmem:[#allocation6 + $0x28] sm:$0xf]
    %v2832 = vld [vmem:[#allocation6 + $0x2c] sm:$0xf]
    %v2833 = vld [vmem:[#allocation6 + $0x30] sm:$0xf]
    %v2834 = vld [vmem:[#allocation6 + $0x34] sm:$0xf]
    %v2835 = vld [vmem:[#allocation6 + $0x38] sm:$0xf]
    %v2836 = vld [vmem:[#allocation6 + $0x3c] sm:$0xf]
    %v2837 = vld [vmem:[%s1 + $0x4] ss:$0 sm:$0xff]
    %v2854 = vunpack.c.l.b16 %v2821
    %v2855 = vunpack.c.l.b16 %v2822
    %v2856 = vunpack.c.l.b16 %v2823
    %v2857 = vunpack.c.l.b16 %v2824
    %v2858 = vunpack.c.l.b16 %v2825
    %v2859 = vunpack.c.l.b16 %v2826
    %v2860 = vunpack.c.l.b16 %v2827
    %v2861 = vunpack.c.l.b16 %v2828
    %v2862 = vunpack.c.l.b16 %v2829
    %v2863 = vunpack.c.l.b16 %v2830
    %v2864 = vunpack.c.l.b16 %v2831
    %v2865 = vunpack.c.l.b16 %v2832
    %v2866 = vunpack.c.l.b16 %v2833
    %v2867 = vunpack.c.l.b16 %v2834
    %v2868 = vunpack.c.l.b16 %v2835
    %v2869 = vunpack.c.l.b16 %v2836
    %v2870 = vpack.c.b16 %v2855, %v2854
    %v2871 = vpack.c.b16 %v2857, %v2856
    %v2872 = vpack.c.b16 %v2859, %v2858
    %v2873 = vpack.c.b16 %v2861, %v2860
    %v2874 = vpack.c.b16 %v2863, %v2862
    %v2875 = vpack.c.b16 %v2865, %v2864
    %v2876 = vpack.c.b16 %v2867, %v2866
    %v2877 = vpack.c.b16 %v2869, %v2868
    %2886 = vmatprep.subr.bf16.mxu0 0
    %2887 = vmatpush1.bf16.msra.mxu0 %v2877
    %2888 = vmatprep.subr.bf16.mxu0 0
    %2889 = vmatpush1.bf16.msra.mxu0 %v2876
    %2890 = vmatprep.subr.bf16.mxu0 0
    %2891 = vmatpush1.bf16.msra.mxu0 %v2875
    %2892 = vmatprep.subr.bf16.mxu0 0
    %2893 = vmatpush1.bf16.msra.mxu0 %v2874
    %2894 = vmatprep.subr.bf16.mxu0 0
    %2895 = vmatpush1.bf16.msra.mxu0 %v2873
    %2896 = vmatprep.subr.bf16.mxu0 0
    %2897 = vmatpush1.bf16.msra.mxu0 %v2872
    %2898 = vmatprep.subr.bf16.mxu0 0
    %2899 = vmatpush1.bf16.msra.mxu0 %v2871
    %2900 = vmatprep.subr.bf16.mxu0 0
    %2901 = vmatpush1.bf16.msra.mxu0 %v2870
    %2902 = vmatprep.subr.bf16.mxu0 0
    %2903 = vmatpush2.bf16.msra.mxu0 0
    %2904 = vmatprep.subr.bf16.mxu0 0
    %2905 = vmatpush2.bf16.msra.mxu0 0
    %2906 = vmatprep.subr.bf16.mxu0 0
    %2907 = vmatpush2.bf16.msra.mxu0 0
    %2908 = vmatprep.subr.bf16.mxu0 0
    %2909 = vmatpush2.bf16.msra.mxu0 0
    %2910 = vmatprep.subr.bf16.mxu0 0
    %2911 = vmatpush2.bf16.msra.mxu0 0
    %2912 = vmatprep.subr.bf16.mxu0 0
    %2913 = vmatpush2.bf16.msra.mxu0 0
    %2914 = vmatprep.subr.bf16.mxu0 0
    %2915 = vmatpush2.bf16.msra.mxu0 0
    %2916 = vmatprep.subr.bf16.mxu0 0
    %2917 = vmatpush2.bf16.msra.mxu0 0
    %2918 = vmatprep.mubr.bf16.mxu0 0
    %2919 = vmatmul.mubr.bf16.gmra.mxu0 %v2820
    %v2920 = vpop.f32.mrf.mxu0
    %v2921 = vadd.f32 %v2837, %v2920
    %v2922 = vpop.f32.mrf.mxu0
    %v2923 = vpop.f32.mrf.mxu0
    %v2924 = vpop.f32.mrf.mxu0
    %2925 = vdwg.mxu0
    %v2926 = vmax.f32 %v2921, 0.0
    %v2927 = vpack.c.bf16 %v2926, %v2926
    %v2928 = vld [vmem:[#allocation7] sm:$0xf]
    %v2929 = vld [vmem:[#allocation7 + $0x4] sm:$0xf]
    %v2930 = vld [vmem:[#allocation7 + $0x8] sm:$0xf]
    %v2931 = vld [vmem:[#allocation7 + $0xc] sm:$0xf]
    %v2932 = vld [vmem:[#allocation7 + $0x10] sm:$0xf]
    %v2933 = vld [vmem:[#allocation7 + $0x14] sm:$0xf]
    %v2934 = vld [vmem:[#allocation7 + $0x18] sm:$0xf]
    %v2935 = vld [vmem:[#allocation7 + $0x1c] sm:$0xf]
    %v2936 = vld [vmem:[#allocation7 + $0x20] sm:$0xf]
    %v2937 = vld [vmem:[#allocation7 + $0x24] sm:$0xf]
    %v2938 = vld [vmem:[#allocation7 + $0x28] sm:$0xf]
    %v2939 = vld [vmem:[#allocation7 + $0x2c] sm:$0xf]
    %v2940 = vld [vmem:[#allocation7 + $0x30] sm:$0xf]
    %v2941 = vld [vmem:[#allocation7 + $0x34] sm:$0xf]
    %v2942 = vld [vmem:[#allocation7 + $0x38] sm:$0xf]
    %v2943 = vld [vmem:[#allocation7 + $0x3c] sm:$0xf]
    %v2944 = vld [vmem:[%s1 + $0x5] ss:$0 sm:$0xff]
    %v2961 = vunpack.c.l.b16 %v2928
    %v2962 = vunpack.c.l.b16 %v2929
    %v2963 = vunpack.c.l.b16 %v2930
    %v2964 = vunpack.c.l.b16 %v2931
    %v2965 = vunpack.c.l.b16 %v2932
    %v2966 = vunpack.c.l.b16 %v2933
    %v2967 = vunpack.c.l.b16 %v2934
    %v2968 = vunpack.c.l.b16 %v2935
    %v2969 = vunpack.c.l.b16 %v2936
    %v2970 = vunpack.c.l.b16 %v2937
    %v2971 = vunpack.c.l.b16 %v2938
    %v2972 = vunpack.c.l.b16 %v2939
    %v2973 = vunpack.c.l.b16 %v2940
    %v2974 = vunpack.c.l.b16 %v2941
    %v2975 = vunpack.c.l.b16 %v2942
    %v2976 = vunpack.c.l.b16 %v2943
    %v2977 = vpack.c.b16 %v2962, %v2961
    %v2978 = vpack.c.b16 %v2964, %v2963
    %v2979 = vpack.c.b16 %v2966, %v2965
    %v2980 = vpack.c.b16 %v2968, %v2967
    %v2981 = vpack.c.b16 %v2970, %v2969
    %v2982 = vpack.c.b16 %v2972, %v2971
    %v2983 = vpack.c.b16 %v2974, %v2973
    %v2984 = vpack.c.b16 %v2976, %v2975
    %2993 = vmatprep.subr.bf16.mxu0 0
    %2994 = vmatpush1.bf16.msra.mxu0 %v2984
    %2995 = vmatprep.subr.bf16.mxu0 0
    %2996 = vmatpush1.bf16.msra.mxu0 %v2983
    %2997 = vmatprep.subr.bf16.mxu0 0
    %2998 = vmatpush1.bf16.msra.mxu0 %v2982
    %2999 = vmatprep.subr.bf16.mxu0 0
    %3000 = vmatpush1.bf16.msra.mxu0 %v2981
    %3001 = vmatprep.subr.bf16.mxu0 0
    %3002 = vmatpush1.bf16.msra.mxu0 %v2980
    %3003 = vmatprep.subr.bf16.mxu0 0
    %3004 = vmatpush1.bf16.msra.mxu0 %v2979
    %3005 = vmatprep.subr.bf16.mxu0 0
    %3006 = vmatpush1.bf16.msra.mxu0 %v2978
    %3007 = vmatprep.subr.bf16.mxu0 0
    %3008 = vmatpush1.bf16.msra.mxu0 %v2977
    %3009 = vmatprep.subr.bf16.mxu0 0
    %3010 = vmatpush2.bf16.msra.mxu0 0
    %3011 = vmatprep.subr.bf16.mxu0 0
    %3012 = vmatpush2.bf16.msra.mxu0 0
    %3013 = vmatprep.subr.bf16.mxu0 0
    %3014 = vmatpush2.bf16.msra.mxu0 0
    %3015 = vmatprep.subr.bf16.mxu0 0
    %3016 = vmatpush2.bf16.msra.mxu0 0
    %3017 = vmatprep.subr.bf16.mxu0 0
    %3018 = vmatpush2.bf16.msra.mxu0 0
    %3019 = vmatprep.subr.bf16.mxu0 0
    %3020 = vmatpush2.bf16.msra.mxu0 0
    %3021 = vmatprep.subr.bf16.mxu0 0
    %3022 = vmatpush2.bf16.msra.mxu0 0
    %3023 = vmatprep.subr.bf16.mxu0 0
    %3024 = vmatpush2.bf16.msra.mxu0 0
    %3025 = vmatprep.mubr.bf16.mxu0 0
    %3026 = vmatmul.mubr.bf16.gmra.mxu0 %v2927
    %v3027 = vpop.f32.mrf.mxu0
    %v3028 = vadd.f32 %v2944, %v3027
    %v3029 = vpop.f32.mrf.mxu0
    %v3030 = vpop.f32.mrf.mxu0
    %v3031 = vpop.f32.mrf.mxu0
    %3032 = vdwg.mxu0
    %v3033 = vmax.f32 %v3028, 0.0
    %v3034 = vpack.c.bf16 %v3033, %v3033
    %v3035 = vld [vmem:[#allocation9] sm:$0xf]
    %v3036 = vld [vmem:[#allocation9 + $0x4] sm:$0xf]
    %v3037 = vld [vmem:[#allocation9 + $0x8] sm:$0xf]
    %v3038 = vld [vmem:[#allocation9 + $0xc] sm:$0xf]
    %v3039 = vld [vmem:[#allocation9 + $0x10] sm:$0xf]
    %v3040 = vld [vmem:[#allocation9 + $0x14] sm:$0xf]
    %v3041 = vld [vmem:[#allocation9 + $0x18] sm:$0xf]
    %v3042 = vld [vmem:[#allocation9 + $0x1c] sm:$0xf]
    %v3043 = vld [vmem:[#allocation9 + $0x20] sm:$0xf]
    %v3044 = vld [vmem:[#allocation9 + $0x24] sm:$0xf]
    %v3045 = vld [vmem:[#allocation9 + $0x28] sm:$0xf]
    %v3046 = vld [vmem:[#allocation9 + $0x2c] sm:$0xf]
    %v3047 = vld [vmem:[#allocation9 + $0x30] sm:$0xf]
    %v3048 = vld [vmem:[#allocation9 + $0x34] sm:$0xf]
    %v3049 = vld [vmem:[#allocation9 + $0x38] sm:$0xf]
    %v3050 = vld [vmem:[#allocation9 + $0x3c] sm:$0xf]
    %v3051 = vld [vmem:[%s1 + $0x6] ss:$0 sm:$0xff]
    %v3068 = vunpack.c.l.b16 %v3035
    %v3069 = vunpack.c.l.b16 %v3036
    %v3070 = vunpack.c.l.b16 %v3037
    %v3071 = vunpack.c.l.b16 %v3038
    %v3072 = vunpack.c.l.b16 %v3039
    %v3073 = vunpack.c.l.b16 %v3040
    %v3074 = vunpack.c.l.b16 %v3041
    %v3075 = vunpack.c.l.b16 %v3042
    %v3076 = vunpack.c.l.b16 %v3043
    %v3077 = vunpack.c.l.b16 %v3044
    %v3078 = vunpack.c.l.b16 %v3045
    %v3079 = vunpack.c.l.b16 %v3046
    %v3080 = vunpack.c.l.b16 %v3047
    %v3081 = vunpack.c.l.b16 %v3048
    %v3082 = vunpack.c.l.b16 %v3049
    %v3083 = vunpack.c.l.b16 %v3050
    %v3084 = vpack.c.b16 %v3069, %v3068
    %v3085 = vpack.c.b16 %v3071, %v3070
    %v3086 = vpack.c.b16 %v3073, %v3072
    %v3087 = vpack.c.b16 %v3075, %v3074
    %v3088 = vpack.c.b16 %v3077, %v3076
    %v3089 = vpack.c.b16 %v3079, %v3078
    %v3090 = vpack.c.b16 %v3081, %v3080
    %v3091 = vpack.c.b16 %v3083, %v3082
    %3100 = vmatprep.subr.bf16.mxu0 0
    %3101 = vmatpush1.bf16.msra.mxu0 %v3091
    %3102 = vmatprep.subr.bf16.mxu0 0
    %3103 = vmatpush1.bf16.msra.mxu0 %v3090
    %3104 = vmatprep.subr.bf16.mxu0 0
    %3105 = vmatpush1.bf16.msra.mxu0 %v3089
    %3106 = vmatprep.subr.bf16.mxu0 0
    %3107 = vmatpush1.bf16.msra.mxu0 %v3088
    %3108 = vmatprep.subr.bf16.mxu0 0
    %3109 = vmatpush1.bf16.msra.mxu0 %v3087
    %3110 = vmatprep.subr.bf16.mxu0 0
    %3111 = vmatpush1.bf16.msra.mxu0 %v3086
    %3112 = vmatprep.subr.bf16.mxu0 0
    %3113 = vmatpush1.bf16.msra.mxu0 %v3085
    %3114 = vmatprep.subr.bf16.mxu0 0
    %3115 = vmatpush1.bf16.msra.mxu0 %v3084
    %3116 = vmatprep.subr.bf16.mxu0 0
    %3117 = vmatpush2.bf16.msra.mxu0 0
    %3118 = vmatprep.subr.bf16.mxu0 0
    %3119 = vmatpush2.bf16.msra.mxu0 0
    %3120 = vmatprep.subr.bf16.mxu0 0
    %3121 = vmatpush2.bf16.msra.mxu0 0
    %3122 = vmatprep.subr.bf16.mxu0 0
    %3123 = vmatpush2.bf16.msra.mxu0 0
    %3124 = vmatprep.subr.bf16.mxu0 0
    %3125 = vmatpush2.bf16.msra.mxu0 0
    %3126 = vmatprep.subr.bf16.mxu0 0
    %3127 = vmatpush2.bf16.msra.mxu0 0
    %3128 = vmatprep.subr.bf16.mxu0 0
    %3129 = vmatpush2.bf16.msra.mxu0 0
    %3130 = vmatprep.subr.bf16.mxu0 0
    %3131 = vmatpush2.bf16.msra.mxu0 0
    %3132 = vmatprep.mubr.bf16.mxu0 0
    %3133 = vmatmul.mubr.bf16.gmra.mxu0 %v3034
    %v3134 = vpop.f32.mrf.mxu0
    %v3135 = vadd.f32 %v3051, %v3134
    %v3136 = vpop.f32.mrf.mxu0
    %v3137 = vpop.f32.mrf.mxu0
    %v3138 = vpop.f32.mrf.mxu0
    %3139 = vdwg.mxu0
    %v3140 = vmax.f32 %v3135, 0.0
    %v3141 = vpack.c.bf16 %v3140, %v3140
    %v3142 = vld [vmem:[#allocation10] sm:$0xf]
    %v3143 = vld [vmem:[#allocation10 + $0x4] sm:$0xf]
    %v3144 = vld [vmem:[#allocation10 + $0x8] sm:$0xf]
    %v3145 = vld [vmem:[#allocation10 + $0xc] sm:$0xf]
    %v3146 = vld [vmem:[#allocation10 + $0x10] sm:$0xf]
    %v3147 = vld [vmem:[#allocation10 + $0x14] sm:$0xf]
    %v3148 = vld [vmem:[#allocation10 + $0x18] sm:$0xf]
    %v3149 = vld [vmem:[#allocation10 + $0x1c] sm:$0xf]
    %v3150 = vld [vmem:[#allocation10 + $0x20] sm:$0xf]
    %v3151 = vld [vmem:[#allocation10 + $0x24] sm:$0xf]
    %v3152 = vld [vmem:[#allocation10 + $0x28] sm:$0xf]
    %v3153 = vld [vmem:[#allocation10 + $0x2c] sm:$0xf]
    %v3154 = vld [vmem:[#allocation10 + $0x30] sm:$0xf]
    %v3155 = vld [vmem:[#allocation10 + $0x34] sm:$0xf]
    %v3156 = vld [vmem:[#allocation10 + $0x38] sm:$0xf]
    %v3157 = vld [vmem:[#allocation10 + $0x3c] sm:$0xf]
    %v3158 = vld [vmem:[%s1 + $0x7] ss:$0 sm:$0xff]
    %v3175 = vunpack.c.l.b16 %v3142
    %v3176 = vunpack.c.l.b16 %v3143
    %v3177 = vunpack.c.l.b16 %v3144
    %v3178 = vunpack.c.l.b16 %v3145
    %v3179 = vunpack.c.l.b16 %v3146
    %v3180 = vunpack.c.l.b16 %v3147
    %v3181 = vunpack.c.l.b16 %v3148
    %v3182 = vunpack.c.l.b16 %v3149
    %v3183 = vunpack.c.l.b16 %v3150
    %v3184 = vunpack.c.l.b16 %v3151
    %v3185 = vunpack.c.l.b16 %v3152
    %v3186 = vunpack.c.l.b16 %v3153
    %v3187 = vunpack.c.l.b16 %v3154
    %v3188 = vunpack.c.l.b16 %v3155
    %v3189 = vunpack.c.l.b16 %v3156
    %v3190 = vunpack.c.l.b16 %v3157
    %v3191 = vpack.c.b16 %v3176, %v3175
    %v3192 = vpack.c.b16 %v3178, %v3177
    %v3193 = vpack.c.b16 %v3180, %v3179
    %v3194 = vpack.c.b16 %v3182, %v3181
    %v3195 = vpack.c.b16 %v3184, %v3183
    %v3196 = vpack.c.b16 %v3186, %v3185
    %v3197 = vpack.c.b16 %v3188, %v3187
    %v3198 = vpack.c.b16 %v3190, %v3189
    %3207 = vmatprep.subr.bf16.mxu0 0
    %3208 = vmatpush1.bf16.msra.mxu0 %v3198
    %3209 = vmatprep.subr.bf16.mxu0 0
    %3210 = vmatpush1.bf16.msra.mxu0 %v3197
    %3211 = vmatprep.subr.bf16.mxu0 0
    %3212 = vmatpush1.bf16.msra.mxu0 %v3196
    %3213 = vmatprep.subr.bf16.mxu0 0
    %3214 = vmatpush1.bf16.msra.mxu0 %v3195
    %3215 = vmatprep.subr.bf16.mxu0 0
    %3216 = vmatpush1.bf16.msra.mxu0 %v3194
    %3217 = vmatprep.subr.bf16.mxu0 0
    %3218 = vmatpush1.bf16.msra.mxu0 %v3193
    %3219 = vmatprep.subr.bf16.mxu0 0
    %3220 = vmatpush1.bf16.msra.mxu0 %v3192
    %3221 = vmatprep.subr.bf16.mxu0 0
    %3222 = vmatpush1.bf16.msra.mxu0 %v3191
    %3223 = vmatprep.subr.bf16.mxu0 0
    %3224 = vmatpush2.bf16.msra.mxu0 0
    %3225 = vmatprep.subr.bf16.mxu0 0
    %3226 = vmatpush2.bf16.msra.mxu0 0
    %3227 = vmatprep.subr.bf16.mxu0 0
    %3228 = vmatpush2.bf16.msra.mxu0 0
    %3229 = vmatprep.subr.bf16.mxu0 0
    %3230 = vmatpush2.bf16.msra.mxu0 0
    %3231 = vmatprep.subr.bf16.mxu0 0
    %3232 = vmatpush2.bf16.msra.mxu0 0
    %3233 = vmatprep.subr.bf16.mxu0 0
    %3234 = vmatpush2.bf16.msra.mxu0 0
    %3235 = vmatprep.subr.bf16.mxu0 0
    %3236 = vmatpush2.bf16.msra.mxu0 0
    %3237 = vmatprep.subr.bf16.mxu0 0
    %3238 = vmatpush2.bf16.msra.mxu0 0
    %3239 = vmatprep.mubr.bf16.mxu0 0
    %3240 = vmatmul.mubr.bf16.gmra.mxu0 %v3141
    %v3241 = vpop.f32.mrf.mxu0
    %v3242 = vadd.f32 %v3158, %v3241
    %v3243 = vpop.f32.mrf.mxu0
    %v3244 = vpop.f32.mrf.mxu0
    %v3245 = vpop.f32.mrf.mxu0
    %3246 = vdwg.mxu0
    %v3247 = vmax.f32 %v3242, 0.0
    %v3248 = vpack.c.bf16 %v3247, %v3247
    %v3249 = vld [vmem:[#allocation12] sm:$0xf]
    %v3250 = vld [vmem:[#allocation12 + $0x4] sm:$0xf]
    %v3251 = vld [vmem:[#allocation12 + $0x8] sm:$0xf]
    %v3252 = vld [vmem:[#allocation12 + $0xc] sm:$0xf]
    %v3253 = vld [vmem:[#allocation12 + $0x10] sm:$0xf]
    %v3254 = vld [vmem:[#allocation12 + $0x14] sm:$0xf]
    %v3255 = vld [vmem:[#allocation12 + $0x18] sm:$0xf]
    %v3256 = vld [vmem:[#allocation12 + $0x1c] sm:$0xf]
    %v3257 = vld [vmem:[#allocation12 + $0x20] sm:$0xf]
    %v3258 = vld [vmem:[#allocation12 + $0x24] sm:$0xf]
    %v3259 = vld [vmem:[#allocation12 + $0x28] sm:$0xf]
    %v3260 = vld [vmem:[#allocation12 + $0x2c] sm:$0xf]
    %v3261 = vld [vmem:[#allocation12 + $0x30] sm:$0xf]
    %v3262 = vld [vmem:[#allocation12 + $0x34] sm:$0xf]
    %v3263 = vld [vmem:[#allocation12 + $0x38] sm:$0xf]
    %v3264 = vld [vmem:[#allocation12 + $0x3c] sm:$0xf]
    %v3265 = vld [vmem:[%s1 + $0x20] ss:$0 sm:$0xff]
    %v3282 = vunpack.c.l.b16 %v3249
    %v3283 = vunpack.c.l.b16 %v3250
    %v3284 = vunpack.c.l.b16 %v3251
    %v3285 = vunpack.c.l.b16 %v3252
    %v3286 = vunpack.c.l.b16 %v3253
    %v3287 = vunpack.c.l.b16 %v3254
    %v3288 = vunpack.c.l.b16 %v3255
    %v3289 = vunpack.c.l.b16 %v3256
    %v3290 = vunpack.c.l.b16 %v3257
    %v3291 = vunpack.c.l.b16 %v3258
    %v3292 = vunpack.c.l.b16 %v3259
    %v3293 = vunpack.c.l.b16 %v3260
    %v3294 = vunpack.c.l.b16 %v3261
    %v3295 = vunpack.c.l.b16 %v3262
    %v3296 = vunpack.c.l.b16 %v3263
    %v3297 = vunpack.c.l.b16 %v3264
    %v3298 = vpack.c.b16 %v3283, %v3282
    %v3299 = vpack.c.b16 %v3285, %v3284
    %v3300 = vpack.c.b16 %v3287, %v3286
    %v3301 = vpack.c.b16 %v3289, %v3288
    %v3302 = vpack.c.b16 %v3291, %v3290
    %v3303 = vpack.c.b16 %v3293, %v3292
    %v3304 = vpack.c.b16 %v3295, %v3294
    %v3305 = vpack.c.b16 %v3297, %v3296
    %3314 = vmatprep.subr.bf16.mxu0 0
    %3315 = vmatpush1.bf16.msra.mxu0 %v3305
    %3316 = vmatprep.subr.bf16.mxu0 0
    %3317 = vmatpush1.bf16.msra.mxu0 %v3304
    %3318 = vmatprep.subr.bf16.mxu0 0
    %3319 = vmatpush1.bf16.msra.mxu0 %v3303
    %3320 = vmatprep.subr.bf16.mxu0 0
    %3321 = vmatpush1.bf16.msra.mxu0 %v3302
    %3322 = vmatprep.subr.bf16.mxu0 0
    %3323 = vmatpush1.bf16.msra.mxu0 %v3301
    %3324 = vmatprep.subr.bf16.mxu0 0
    %3325 = vmatpush1.bf16.msra.mxu0 %v3300
    %3326 = vmatprep.subr.bf16.mxu0 0
    %3327 = vmatpush1.bf16.msra.mxu0 %v3299
    %3328 = vmatprep.subr.bf16.mxu0 0
    %3329 = vmatpush1.bf16.msra.mxu0 %v3298
    %3330 = vmatprep.subr.bf16.mxu0 0
    %3331 = vmatpush2.bf16.msra.mxu0 0
    %3332 = vmatprep.subr.bf16.mxu0 0
    %3333 = vmatpush2.bf16.msra.mxu0 0
    %3334 = vmatprep.subr.bf16.mxu0 0
    %3335 = vmatpush2.bf16.msra.mxu0 0
    %3336 = vmatprep.subr.bf16.mxu0 0
    %3337 = vmatpush2.bf16.msra.mxu0 0
    %3338 = vmatprep.subr.bf16.mxu0 0
    %3339 = vmatpush2.bf16.msra.mxu0 0
    %3340 = vmatprep.subr.bf16.mxu0 0
    %3341 = vmatpush2.bf16.msra.mxu0 0
    %3342 = vmatprep.subr.bf16.mxu0 0
    %3343 = vmatpush2.bf16.msra.mxu0 0
    %3344 = vmatprep.subr.bf16.mxu0 0
    %3345 = vmatpush2.bf16.msra.mxu0 0
    %3346 = vmatprep.mubr.bf16.mxu0 0
    %3347 = vmatmul.mubr.bf16.gmra.mxu0 %v3248
    %v3348 = vpop.f32.mrf.mxu0
    %v3349 = vadd.f32 %v3265, %v3348
    %v3350 = vpop.f32.mrf.mxu0
    %v3351 = vpop.f32.mrf.mxu0
    %v3352 = vpop.f32.mrf.mxu0
    %3353 = vdwg.mxu0
    %3354 = vst [vmem:[%s11] sm:$0xff] %v3349
    // Predicated region
    $region74: #{deep_dnn_forward.1} parent=1 // pred_check
      _
    $region75: #{deep_dnn_forward.1} parent=1 // pred_check_branch
      %3356 = sbr.rel (0) target = $region77
    $region76: #{deep_dnn_forward.1} parent=1 // pred_region
      _
    $region77: #{deep_dnn_forward.1} parent=1 // pred_fallthru
      _
    // Predicated region
    $region78: #{deep_dnn_forward.1} parent=1 // pred_check
      _
    $region79: #{deep_dnn_forward.1} parent=1 // pred_check_branch
      %3358 = sbr.rel (0) target = $region81
    $region80: #{deep_dnn_forward.1} parent=1 // pred_region
      _
    $region81: #{deep_dnn_forward.1} parent=1 // pred_fallthru
      _
    %3359 = vsyncpa [#allocation3], 1
    %3360 = vsyncpa [#allocation5], 1
    %3361 = vsyncpa [#allocation8], 1
    %3362 = vsyncpa [#allocation11], 1

</llo_original>
